<compile_context>
chip_gen: v5e
topology: v5e:2x2
jax: 0.10.0
libtpu: 0.0.40
codegen_flags: <defaults>
</compile_context>

<pallas_src>
import functools

import jax
import jax.numpy as jnp
from jax.experimental import pallas as pl
from jax.experimental.pallas import tpu as pltpu


# ------------------------------ fused kernel ------------------------------- #
def _fused_attention_kernel(*refs, num_heads, head_dim, scale, has_bias):
    if has_bias:
        (x_ref, w_qkv_ref, b_qkv_ref, w_proj_ref, b_proj_ref,
         bias_ref, o_ref) = refs
    else:
        (x_ref, w_qkv_ref, b_qkv_ref, w_proj_ref, b_proj_ref, o_ref) = refs
        bias_ref = None

    x = x_ref[...]                                    # (N, C)
    N, C = x.shape

    # qkv linear for all heads at once on the MXU.
    qkv = (jnp.dot(x, w_qkv_ref[...], preferred_element_type=jnp.float32)
           + b_qkv_ref[...])                          # (N, 3C)

    # Accumulate the projected output directly (distributed output projection):
    #   concat_h(ctx_h) @ Wp == sum_h ctx_h @ Wp[h]      (Wp passed as (H,Dh,C))
    out = jnp.zeros((N, C), dtype=jnp.float32)
    for h in range(num_heads):                        # unrolled at trace time
        lo = h * head_dim
        # Fold the softmax scale into q: O(N*Dh) multiplies instead of O(N^2).
        q_h = qkv[:, lo:lo + head_dim] * scale                    # (N, Dh)
        k_h = qkv[:, C + lo:C + lo + head_dim]                    # (N, Dh)
        v_h = qkv[:, 2 * C + lo:2 * C + lo + head_dim]            # (N, Dh)

        s = jnp.dot(q_h, k_h.T, preferred_element_type=jnp.float32)   # (N, N)
        if has_bias:
            s = s + bias_ref[h]                       # per-head (N, N) bias

        # Numerically stable softmax with deferred normalization.
        m = jnp.max(s, axis=-1, keepdims=True)
        p = jnp.exp(s - m)                            # unnormalized probs (EUP)
        denom = jnp.sum(p, axis=-1, keepdims=True)    # (N, 1)

        ctx_h = jnp.dot(p, v_h, preferred_element_type=jnp.float32)   # (N, Dh)
        ctx_h = ctx_h * pl.reciprocal(denom)          # exact; approx=True ok in prod

        out = out + jnp.dot(ctx_h, w_proj_ref[h],
                            preferred_element_type=jnp.float32)       # (N, C)

    o_ref[...] = (out + b_proj_ref[...]).astype(o_ref.dtype)


# ------------------------------ full forward ------------------------------- #
def attention_forward(x, params, num_heads, pos_bias=None, qk_scale=None):
    """Reproduces Attention.forward from pointMAEEncoder.py with one pallas_call.

    x: (B, N, C) float32
    params: dict with 'w_qkv' (C, 3C), 'b_qkv' (3C,), 'w_proj' (C, C), 'b_proj' (C,)
    pos_bias: optional (B, H, G, G) with G == N or G == N - 1
    """
    B, N, C = x.shape
    head_dim = C // num_heads
    scale = qk_scale if qk_scale is not None else head_dim ** (-0.5)

    w_qkv = params["w_qkv"].astype(jnp.float32)
    b_qkv = params["b_qkv"].astype(jnp.float32).reshape(1, 3 * C)
    # Head-major projection weight: (H, Dh, C). The kernel indexes the leading
    # dim per head (cheap ref load) instead of sub-lane slicing a (C, C) weight.
    w_proj = params["w_proj"].astype(jnp.float32).reshape(num_heads, head_dim, C)
    b_proj = params["b_proj"].astype(jnp.float32).reshape(1, C)

    has_bias = pos_bias is not None

    inputs = [x.astype(jnp.float32), w_qkv, b_qkv, w_proj, b_proj]
    in_specs = [
        pl.BlockSpec((None, N, C), lambda b: (b, 0, 0)),           # x, per-batch
        pl.BlockSpec((C, 3 * C), lambda b: (0, 0)),                # weights resident
        pl.BlockSpec((1, 3 * C), lambda b: (0, 0)),
        pl.BlockSpec((num_heads, head_dim, C), lambda b: (0, 0, 0)),
        pl.BlockSpec((1, C), lambda b: (0, 0)),
    ]

    if has_bias:
        if pos_bias.shape[-1] == N - 1:
            # F.pad(pos_bias, (1, 0, 1, 0)) equivalent; kept in the wrapper (one
            # cheap XLA pad on the bias) to keep the Mosaic lowering simple.
            pos_bias = jnp.pad(pos_bias, ((0, 0), (0, 0), (1, 0), (1, 0)))
        inputs.append(pos_bias.astype(jnp.float32))
        in_specs.append(pl.BlockSpec((None, num_heads, N, N),
                                     lambda b: (b, 0, 0, 0)))

    kernel = functools.partial(
        _fused_attention_kernel,
        num_heads=num_heads,
        head_dim=head_dim,
        scale=float(scale),
        has_bias=has_bias,
    )

    out = pl.pallas_call(
        kernel,
        out_shape=jax.ShapeDtypeStruct((B, N, C), jnp.float32),
        grid=(B,),
        in_specs=in_specs,
        out_specs=pl.BlockSpec((None, N, C), lambda b: (b, 0, 0)),
        compiler_params=pltpu.CompilerParams(
            dimension_semantics=("parallel",)
        ),
    )(*inputs)
    return out


# --------------------------- pure-JAX reference ---------------------------- #
def attention_reference(x, params, num_heads, pos_bias=None, qk_scale=None):
    B, N, C = x.shape
    head_dim = C // num_heads
    scale = qk_scale if qk_scale is not None else head_dim ** (-0.5)
    qkv = x.reshape(B * N, C) @ params["w_qkv"] + params["b_qkv"]
    qkv = qkv.reshape(B, N, 3, num_heads, head_dim).transpose(2, 0, 3, 1, 4)
    q, k, v = qkv[0], qkv[1], qkv[2]
    attn = jnp.einsum("bhnd,bhmd->bhnm", q, k) * scale
    if pos_bias is not None:
        if pos_bias.shape[-1] == N - 1:
            pos_bias = jnp.pad(pos_bias, ((0, 0), (0, 0), (1, 0), (1, 0)))
        attn = attn + pos_bias
    attn = jax.nn.softmax(attn, axis=-1)
    out = jnp.einsum("bhnm,bhmd->bhnd", attn, v)
    out = out.transpose(0, 2, 1, 3).reshape(B * N, C)
    out = out @ params["w_proj"] + params["b_proj"]
    return out.reshape(B, N, C)


# ---------------------------------- main ----------------------------------- #
if __name__ == "__main__":
    B, N, C, H = 2, 8, 32, 8  # batch, tokens, dim, num_heads (head_dim = 4)

    key = jax.random.PRNGKey(0)
    kx, kw1, kw2, kb2, kpb = jax.random.split(key, 5)

    x = jax.random.normal(kx, (B, N, C), dtype=jnp.float32)

    # Deterministic parameter init (qkv_bias=False -> zero bias for qkv).
    params = {
        "w_qkv": jax.random.normal(kw1, (C, 3 * C), dtype=jnp.float32) * 0.05,
        "b_qkv": jnp.zeros((3 * C,), dtype=jnp.float32),
        "w_proj": jax.random.normal(kw2, (C, C), dtype=jnp.float32) * 0.05,
        "b_proj": jax.random.normal(kb2, (C,), dtype=jnp.float32) * 0.01,
    }

    # pos_bias of shape (B, H, N-1, N-1) to exercise the F.pad branch.
    pos_bias = jax.random.normal(kpb, (B, H, N - 1, N - 1), dtype=jnp.float32) * 0.1

    # Biased path (exercises the pad branch) and bias-free path (separate variant).
    out_b = attention_forward(x, params, num_heads=H, pos_bias=pos_bias)
    out_nb = attention_forward(x, params, num_heads=H, pos_bias=None)
    out_b, out_nb = jax.block_until_ready((out_b, out_nb))

    ref_b = attention_reference(x, params, num_heads=H, pos_bias=pos_bias)
    ref_nb = attention_reference(x, params, num_heads=H, pos_bias=None)

    assert out_b.shape == (B, N, C) and out_nb.shape == (B, N, C)
    assert jnp.allclose(out_b, ref_b, atol=1e-4, rtol=1e-4), "mismatch (with bias)"
    assert jnp.allclose(out_nb, ref_nb, atol=1e-4, rtol=1e-4), "mismatch (no bias)"

    print("KERNEL_OK")
</pallas_src>

<mosaic_0001>
module attributes {stable_mosaic.version = 11 : i64} {
  func.func @_fused_attention_kernel(%arg0: i32, %arg1: memref<1x8x32xf32, #tpu.memory_space<vmem>>, %arg2: memref<32x96xf32, #tpu.memory_space<vmem>>, %arg3: memref<1x96xf32, #tpu.memory_space<vmem>>, %arg4: memref<8x4x32xf32, #tpu.memory_space<vmem>>, %arg5: memref<1x32xf32, #tpu.memory_space<vmem>>, %arg6: memref<1x8x8x8xf32, #tpu.memory_space<vmem>>, %arg7: memref<1x8x32xf32, #tpu.memory_space<vmem>>) attributes {dimension_semantics = [#tpu.dimension_semantics<parallel>], iteration_bounds = array<i64: 2>, scalar_prefetch = 0 : i64, scratch_operands = 0 : i64, tpu.core_type = #tpu.core_type<tc>, window_params = [{transform_indices = @transform_0, window_bounds = array<i64: 1, 8, 32>}, {pipeline_mode = #tpu.pipeline_mode<synchronous>, transform_indices = @transform_1, window_bounds = array<i64: 32, 96>}, {pipeline_mode = #tpu.pipeline_mode<synchronous>, transform_indices = @transform_2, window_bounds = array<i64: 1, 96>}, {pipeline_mode = #tpu.pipeline_mode<synchronous>, transform_indices = @transform_3, window_bounds = array<i64: 8, 4, 32>}, {pipeline_mode = #tpu.pipeline_mode<synchronous>, transform_indices = @transform_4, window_bounds = array<i64: 1, 32>}, {transform_indices = @transform_5, window_bounds = array<i64: 1, 8, 8, 8>}, {transform_indices = @transform_6, window_bounds = array<i64: 1, 8, 32>}]} {
    %c0 = arith.constant 0 : index
    %c0_0 = arith.constant 0 : index
    %c0_1 = arith.constant 0 : index
    %0 = vector.load %arg1[%c0, %c0_0, %c0_1] : memref<1x8x32xf32, #tpu.memory_space<vmem>>, vector<1x8x32xf32>
    %1 = vector.shape_cast %0 : vector<1x8x32xf32> to vector<8x32xf32>
    %c0_2 = arith.constant 0 : index
    %c0_3 = arith.constant 0 : index
    %2 = vector.load %arg2[%c0_2, %c0_3] : memref<32x96xf32, #tpu.memory_space<vmem>>, vector<32x96xf32>
    %cst = arith.constant dense<0.000000e+00> : vector<8x96xf32>
    %3 = tpu.matmul %1, %2, %cst {dimension_numbers = #tpu.dot_dimension_numbers<[1], [0], [0], [1], [0, 0, 1, 1], [], []>} : vector<8x32xf32>, vector<32x96xf32>, vector<8x96xf32> -> vector<8x96xf32>
    %c0_4 = arith.constant 0 : index
    %c0_5 = arith.constant 0 : index
    %4 = vector.load %arg3[%c0_4, %c0_5] : memref<1x96xf32, #tpu.memory_space<vmem>>, vector<1x96xf32>
    %5 = vector.broadcast %4 : vector<1x96xf32> to vector<8x96xf32>
    %6 = arith.addf %3, %5 : vector<8x96xf32>
    %cst_6 = arith.constant 0.000000e+00 : f32
    %7 = vector.broadcast %cst_6 : f32 to vector<8x32xf32>
    %8 = vector.extract_strided_slice %6 {offsets = [0, 0], sizes = [8, 4], strides = [1, 1]} : vector<8x96xf32> to vector<8x4xf32>
    %cst_7 = arith.constant 5.000000e-01 : f32
    %9 = vector.broadcast %cst_7 : f32 to vector<8x4xf32>
    %10 = arith.mulf %8, %9 : vector<8x4xf32>
    %11 = vector.extract_strided_slice %6 {offsets = [0, 32], sizes = [8, 4], strides = [1, 1]} : vector<8x96xf32> to vector<8x4xf32>
    %12 = vector.extract_strided_slice %6 {offsets = [0, 64], sizes = [8, 4], strides = [1, 1]} : vector<8x96xf32> to vector<8x4xf32>
    %13 = tpu.transpose %11, [1, 0] : vector<8x4xf32> -> vector<4x8xf32>
    %cst_8 = arith.constant dense<0.000000e+00> : vector<8x8xf32>
    %14 = tpu.matmul %10, %13, %cst_8 {dimension_numbers = #tpu.dot_dimension_numbers<[1], [0], [0], [1], [0, 0, 1, 1], [], []>} : vector<8x4xf32>, vector<4x8xf32>, vector<8x8xf32> -> vector<8x8xf32>
    %c0_9 = arith.constant 0 : index
    %c0_10 = arith.constant 0 : index
    %c0_11 = arith.constant 0 : index
    %c0_12 = arith.constant 0 : index
    %15 = vector.load %arg6[%c0_9, %c0_10, %c0_11, %c0_12] : memref<1x8x8x8xf32, #tpu.memory_space<vmem>>, vector<1x1x8x8xf32>
    %16 = vector.shape_cast %15 : vector<1x1x8x8xf32> to vector<8x8xf32>
    %17 = arith.addf %14, %16 : vector<8x8xf32>
    %cst_13 = arith.constant dense<0xFF800000> : vector<8xf32>
    %18 = vector.multi_reduction <maximumf>, %17, %cst_13 [1] : vector<8x8xf32> to vector<8xf32>
    %19 = vector.shape_cast %18 : vector<8xf32> to vector<8x1xf32>
    %20 = vector.broadcast %19 : vector<8x1xf32> to vector<8x8xf32>
    %21 = arith.subf %17, %20 : vector<8x8xf32>
    %22 = math.exp %21 : vector<8x8xf32>
    %cst_14 = arith.constant dense<0.000000e+00> : vector<8xf32>
    %23 = vector.multi_reduction <add>, %22, %cst_14 [1] : vector<8x8xf32> to vector<8xf32>
    %24 = vector.shape_cast %23 : vector<8xf32> to vector<8x1xf32>
    %cst_15 = arith.constant dense<0.000000e+00> : vector<8x4xf32>
    %25 = tpu.matmul %22, %12, %cst_15 {dimension_numbers = #tpu.dot_dimension_numbers<[1], [0], [0], [1], [0, 0, 1, 1], [], []>} : vector<8x8xf32>, vector<8x4xf32>, vector<8x4xf32> -> vector<8x4xf32>
    %26 = tpu.reciprocal %24 : vector<8x1xf32> -> vector<8x1xf32>
    %27 = vector.broadcast %26 : vector<8x1xf32> to vector<8x4xf32>
    %28 = arith.mulf %25, %27 : vector<8x4xf32>
    %c0_16 = arith.constant 0 : index
    %c0_17 = arith.constant 0 : index
    %c0_18 = arith.constant 0 : index
    %29 = vector.load %arg4[%c0_16, %c0_17, %c0_18] : memref<8x4x32xf32, #tpu.memory_space<vmem>>, vector<1x4x32xf32>
    %30 = vector.shape_cast %29 : vector<1x4x32xf32> to vector<4x32xf32>
    %cst_19 = arith.constant dense<0.000000e+00> : vector<8x32xf32>
    %31 = tpu.matmul %28, %30, %cst_19 {dimension_numbers = #tpu.dot_dimension_numbers<[1], [0], [0], [1], [0, 0, 1, 1], [], []>} : vector<8x4xf32>, vector<4x32xf32>, vector<8x32xf32> -> vector<8x32xf32>
    %32 = arith.addf %7, %31 : vector<8x32xf32>
    %33 = vector.extract_strided_slice %6 {offsets = [0, 4], sizes = [8, 4], strides = [1, 1]} : vector<8x96xf32> to vector<8x4xf32>
    %cst_20 = arith.constant 5.000000e-01 : f32
    %34 = vector.broadcast %cst_20 : f32 to vector<8x4xf32>
    %35 = arith.mulf %33, %34 : vector<8x4xf32>
    %36 = vector.extract_strided_slice %6 {offsets = [0, 36], sizes = [8, 4], strides = [1, 1]} : vector<8x96xf32> to vector<8x4xf32>
    %37 = vector.extract_strided_slice %6 {offsets = [0, 68], sizes = [8, 4], strides = [1, 1]} : vector<8x96xf32> to vector<8x4xf32>
    %38 = tpu.transpose %36, [1, 0] : vector<8x4xf32> -> vector<4x8xf32>
    %cst_21 = arith.constant dense<0.000000e+00> : vector<8x8xf32>
    %39 = tpu.matmul %35, %38, %cst_21 {dimension_numbers = #tpu.dot_dimension_numbers<[1], [0], [0], [1], [0, 0, 1, 1], [], []>} : vector<8x4xf32>, vector<4x8xf32>, vector<8x8xf32> -> vector<8x8xf32>
    %c0_22 = arith.constant 0 : index
    %c1 = arith.constant 1 : index
    %c0_23 = arith.constant 0 : index
    %c0_24 = arith.constant 0 : index
    %40 = vector.load %arg6[%c0_22, %c1, %c0_23, %c0_24] : memref<1x8x8x8xf32, #tpu.memory_space<vmem>>, vector<1x1x8x8xf32>
    %41 = vector.shape_cast %40 : vector<1x1x8x8xf32> to vector<8x8xf32>
    %42 = arith.addf %39, %41 : vector<8x8xf32>
    %cst_25 = arith.constant dense<0xFF800000> : vector<8xf32>
    %43 = vector.multi_reduction <maximumf>, %42, %cst_25 [1] : vector<8x8xf32> to vector<8xf32>
    %44 = vector.shape_cast %43 : vector<8xf32> to vector<8x1xf32>
    %45 = vector.broadcast %44 : vector<8x1xf32> to vector<8x8xf32>
    %46 = arith.subf %42, %45 : vector<8x8xf32>
    %47 = math.exp %46 : vector<8x8xf32>
    %cst_26 = arith.constant dense<0.000000e+00> : vector<8xf32>
    %48 = vector.multi_reduction <add>, %47, %cst_26 [1] : vector<8x8xf32> to vector<8xf32>
    %49 = vector.shape_cast %48 : vector<8xf32> to vector<8x1xf32>
    %cst_27 = arith.constant dense<0.000000e+00> : vector<8x4xf32>
    %50 = tpu.matmul %47, %37, %cst_27 {dimension_numbers = #tpu.dot_dimension_numbers<[1], [0], [0], [1], [0, 0, 1, 1], [], []>} : vector<8x8xf32>, vector<8x4xf32>, vector<8x4xf32> -> vector<8x4xf32>
    %51 = tpu.reciprocal %49 : vector<8x1xf32> -> vector<8x1xf32>
    %52 = vector.broadcast %51 : vector<8x1xf32> to vector<8x4xf32>
    %53 = arith.mulf %50, %52 : vector<8x4xf32>
    %c1_28 = arith.constant 1 : index
    %c0_29 = arith.constant 0 : index
    %c0_30 = arith.constant 0 : index
    %54 = vector.load %arg4[%c1_28, %c0_29, %c0_30] : memref<8x4x32xf32, #tpu.memory_space<vmem>>, vector<1x4x32xf32>
    %55 = vector.shape_cast %54 : vector<1x4x32xf32> to vector<4x32xf32>
    %cst_31 = arith.constant dense<0.000000e+00> : vector<8x32xf32>
    %56 = tpu.matmul %53, %55, %cst_31 {dimension_numbers = #tpu.dot_dimension_numbers<[1], [0], [0], [1], [0, 0, 1, 1], [], []>} : vector<8x4xf32>, vector<4x32xf32>, vector<8x32xf32> -> vector<8x32xf32>
    %57 = arith.addf %32, %56 : vector<8x32xf32>
    %58 = vector.extract_strided_slice %6 {offsets = [0, 8], sizes = [8, 4], strides = [1, 1]} : vector<8x96xf32> to vector<8x4xf32>
    %cst_32 = arith.constant 5.000000e-01 : f32
    %59 = vector.broadcast %cst_32 : f32 to vector<8x4xf32>
    %60 = arith.mulf %58, %59 : vector<8x4xf32>
    %61 = vector.extract_strided_slice %6 {offsets = [0, 40], sizes = [8, 4], strides = [1, 1]} : vector<8x96xf32> to vector<8x4xf32>
    %62 = vector.extract_strided_slice %6 {offsets = [0, 72], sizes = [8, 4], strides = [1, 1]} : vector<8x96xf32> to vector<8x4xf32>
    %63 = tpu.transpose %61, [1, 0] : vector<8x4xf32> -> vector<4x8xf32>
    %cst_33 = arith.constant dense<0.000000e+00> : vector<8x8xf32>
    %64 = tpu.matmul %60, %63, %cst_33 {dimension_numbers = #tpu.dot_dimension_numbers<[1], [0], [0], [1], [0, 0, 1, 1], [], []>} : vector<8x4xf32>, vector<4x8xf32>, vector<8x8xf32> -> vector<8x8xf32>
    %c0_34 = arith.constant 0 : index
    %c2 = arith.constant 2 : index
    %c0_35 = arith.constant 0 : index
    %c0_36 = arith.constant 0 : index
    %65 = vector.load %arg6[%c0_34, %c2, %c0_35, %c0_36] : memref<1x8x8x8xf32, #tpu.memory_space<vmem>>, vector<1x1x8x8xf32>
    %66 = vector.shape_cast %65 : vector<1x1x8x8xf32> to vector<8x8xf32>
    %67 = arith.addf %64, %66 : vector<8x8xf32>
    %cst_37 = arith.constant dense<0xFF800000> : vector<8xf32>
    %68 = vector.multi_reduction <maximumf>, %67, %cst_37 [1] : vector<8x8xf32> to vector<8xf32>
    %69 = vector.shape_cast %68 : vector<8xf32> to vector<8x1xf32>
    %70 = vector.broadcast %69 : vector<8x1xf32> to vector<8x8xf32>
    %71 = arith.subf %67, %70 : vector<8x8xf32>
    %72 = math.exp %71 : vector<8x8xf32>
    %cst_38 = arith.constant dense<0.000000e+00> : vector<8xf32>
    %73 = vector.multi_reduction <add>, %72, %cst_38 [1] : vector<8x8xf32> to vector<8xf32>
    %74 = vector.shape_cast %73 : vector<8xf32> to vector<8x1xf32>
    %cst_39 = arith.constant dense<0.000000e+00> : vector<8x4xf32>
    %75 = tpu.matmul %72, %62, %cst_39 {dimension_numbers = #tpu.dot_dimension_numbers<[1], [0], [0], [1], [0, 0, 1, 1], [], []>} : vector<8x8xf32>, vector<8x4xf32>, vector<8x4xf32> -> vector<8x4xf32>
    %76 = tpu.reciprocal %74 : vector<8x1xf32> -> vector<8x1xf32>
    %77 = vector.broadcast %76 : vector<8x1xf32> to vector<8x4xf32>
    %78 = arith.mulf %75, %77 : vector<8x4xf32>
    %c2_40 = arith.constant 2 : index
    %c0_41 = arith.constant 0 : index
    %c0_42 = arith.constant 0 : index
    %79 = vector.load %arg4[%c2_40, %c0_41, %c0_42] : memref<8x4x32xf32, #tpu.memory_space<vmem>>, vector<1x4x32xf32>
    %80 = vector.shape_cast %79 : vector<1x4x32xf32> to vector<4x32xf32>
    %cst_43 = arith.constant dense<0.000000e+00> : vector<8x32xf32>
    %81 = tpu.matmul %78, %80, %cst_43 {dimension_numbers = #tpu.dot_dimension_numbers<[1], [0], [0], [1], [0, 0, 1, 1], [], []>} : vector<8x4xf32>, vector<4x32xf32>, vector<8x32xf32> -> vector<8x32xf32>
    %82 = arith.addf %57, %81 : vector<8x32xf32>
    %83 = vector.extract_strided_slice %6 {offsets = [0, 12], sizes = [8, 4], strides = [1, 1]} : vector<8x96xf32> to vector<8x4xf32>
    %cst_44 = arith.constant 5.000000e-01 : f32
    %84 = vector.broadcast %cst_44 : f32 to vector<8x4xf32>
    %85 = arith.mulf %83, %84 : vector<8x4xf32>
    %86 = vector.extract_strided_slice %6 {offsets = [0, 44], sizes = [8, 4], strides = [1, 1]} : vector<8x96xf32> to vector<8x4xf32>
    %87 = vector.extract_strided_slice %6 {offsets = [0, 76], sizes = [8, 4], strides = [1, 1]} : vector<8x96xf32> to vector<8x4xf32>
    %88 = tpu.transpose %86, [1, 0] : vector<8x4xf32> -> vector<4x8xf32>
    %cst_45 = arith.constant dense<0.000000e+00> : vector<8x8xf32>
    %89 = tpu.matmul %85, %88, %cst_45 {dimension_numbers = #tpu.dot_dimension_numbers<[1], [0], [0], [1], [0, 0, 1, 1], [], []>} : vector<8x4xf32>, vector<4x8xf32>, vector<8x8xf32> -> vector<8x8xf32>
    %c0_46 = arith.constant 0 : index
    %c3 = arith.constant 3 : index
    %c0_47 = arith.constant 0 : index
    %c0_48 = arith.constant 0 : index
    %90 = vector.load %arg6[%c0_46, %c3, %c0_47, %c0_48] : memref<1x8x8x8xf32, #tpu.memory_space<vmem>>, vector<1x1x8x8xf32>
    %91 = vector.shape_cast %90 : vector<1x1x8x8xf32> to vector<8x8xf32>
    %92 = arith.addf %89, %91 : vector<8x8xf32>
    %cst_49 = arith.constant dense<0xFF800000> : vector<8xf32>
    %93 = vector.multi_reduction <maximumf>, %92, %cst_49 [1] : vector<8x8xf32> to vector<8xf32>
    %94 = vector.shape_cast %93 : vector<8xf32> to vector<8x1xf32>
    %95 = vector.broadcast %94 : vector<8x1xf32> to vector<8x8xf32>
    %96 = arith.subf %92, %95 : vector<8x8xf32>
    %97 = math.exp %96 : vector<8x8xf32>
    %cst_50 = arith.constant dense<0.000000e+00> : vector<8xf32>
    %98 = vector.multi_reduction <add>, %97, %cst_50 [1] : vector<8x8xf32> to vector<8xf32>
    %99 = vector.shape_cast %98 : vector<8xf32> to vector<8x1xf32>
    %cst_51 = arith.constant dense<0.000000e+00> : vector<8x4xf32>
    %100 = tpu.matmul %97, %87, %cst_51 {dimension_numbers = #tpu.dot_dimension_numbers<[1], [0], [0], [1], [0, 0, 1, 1], [], []>} : vector<8x8xf32>, vector<8x4xf32>, vector<8x4xf32> -> vector<8x4xf32>
    %101 = tpu.reciprocal %99 : vector<8x1xf32> -> vector<8x1xf32>
    %102 = vector.broadcast %101 : vector<8x1xf32> to vector<8x4xf32>
    %103 = arith.mulf %100, %102 : vector<8x4xf32>
    %c3_52 = arith.constant 3 : index
    %c0_53 = arith.constant 0 : index
    %c0_54 = arith.constant 0 : index
    %104 = vector.load %arg4[%c3_52, %c0_53, %c0_54] : memref<8x4x32xf32, #tpu.memory_space<vmem>>, vector<1x4x32xf32>
    %105 = vector.shape_cast %104 : vector<1x4x32xf32> to vector<4x32xf32>
    %cst_55 = arith.constant dense<0.000000e+00> : vector<8x32xf32>
    %106 = tpu.matmul %103, %105, %cst_55 {dimension_numbers = #tpu.dot_dimension_numbers<[1], [0], [0], [1], [0, 0, 1, 1], [], []>} : vector<8x4xf32>, vector<4x32xf32>, vector<8x32xf32> -> vector<8x32xf32>
    %107 = arith.addf %82, %106 : vector<8x32xf32>
    %108 = vector.extract_strided_slice %6 {offsets = [0, 16], sizes = [8, 4], strides = [1, 1]} : vector<8x96xf32> to vector<8x4xf32>
    %cst_56 = arith.constant 5.000000e-01 : f32
    %109 = vector.broadcast %cst_56 : f32 to vector<8x4xf32>
    %110 = arith.mulf %108, %109 : vector<8x4xf32>
    %111 = vector.extract_strided_slice %6 {offsets = [0, 48], sizes = [8, 4], strides = [1, 1]} : vector<8x96xf32> to vector<8x4xf32>
    %112 = vector.extract_strided_slice %6 {offsets = [0, 80], sizes = [8, 4], strides = [1, 1]} : vector<8x96xf32> to vector<8x4xf32>
    %113 = tpu.transpose %111, [1, 0] : vector<8x4xf32> -> vector<4x8xf32>
    %cst_57 = arith.constant dense<0.000000e+00> : vector<8x8xf32>
    %114 = tpu.matmul %110, %113, %cst_57 {dimension_numbers = #tpu.dot_dimension_numbers<[1], [0], [0], [1], [0, 0, 1, 1], [], []>} : vector<8x4xf32>, vector<4x8xf32>, vector<8x8xf32> -> vector<8x8xf32>
    %c0_58 = arith.constant 0 : index
    %c4 = arith.constant 4 : index
    %c0_59 = arith.constant 0 : index
    %c0_60 = arith.constant 0 : index
    %115 = vector.load %arg6[%c0_58, %c4, %c0_59, %c0_60] : memref<1x8x8x8xf32, #tpu.memory_space<vmem>>, vector<1x1x8x8xf32>
    %116 = vector.shape_cast %115 : vector<1x1x8x8xf32> to vector<8x8xf32>
    %117 = arith.addf %114, %116 : vector<8x8xf32>
    %cst_61 = arith.constant dense<0xFF800000> : vector<8xf32>
    %118 = vector.multi_reduction <maximumf>, %117, %cst_61 [1] : vector<8x8xf32> to vector<8xf32>
    %119 = vector.shape_cast %118 : vector<8xf32> to vector<8x1xf32>
    %120 = vector.broadcast %119 : vector<8x1xf32> to vector<8x8xf32>
    %121 = arith.subf %117, %120 : vector<8x8xf32>
    %122 = math.exp %121 : vector<8x8xf32>
    %cst_62 = arith.constant dense<0.000000e+00> : vector<8xf32>
    %123 = vector.multi_reduction <add>, %122, %cst_62 [1] : vector<8x8xf32> to vector<8xf32>
    %124 = vector.shape_cast %123 : vector<8xf32> to vector<8x1xf32>
    %cst_63 = arith.constant dense<0.000000e+00> : vector<8x4xf32>
    %125 = tpu.matmul %122, %112, %cst_63 {dimension_numbers = #tpu.dot_dimension_numbers<[1], [0], [0], [1], [0, 0, 1, 1], [], []>} : vector<8x8xf32>, vector<8x4xf32>, vector<8x4xf32> -> vector<8x4xf32>
    %126 = tpu.reciprocal %124 : vector<8x1xf32> -> vector<8x1xf32>
    %127 = vector.broadcast %126 : vector<8x1xf32> to vector<8x4xf32>
    %128 = arith.mulf %125, %127 : vector<8x4xf32>
    %c4_64 = arith.constant 4 : index
    %c0_65 = arith.constant 0 : index
    %c0_66 = arith.constant 0 : index
    %129 = vector.load %arg4[%c4_64, %c0_65, %c0_66] : memref<8x4x32xf32, #tpu.memory_space<vmem>>, vector<1x4x32xf32>
    %130 = vector.shape_cast %129 : vector<1x4x32xf32> to vector<4x32xf32>
    %cst_67 = arith.constant dense<0.000000e+00> : vector<8x32xf32>
    %131 = tpu.matmul %128, %130, %cst_67 {dimension_numbers = #tpu.dot_dimension_numbers<[1], [0], [0], [1], [0, 0, 1, 1], [], []>} : vector<8x4xf32>, vector<4x32xf32>, vector<8x32xf32> -> vector<8x32xf32>
    %132 = arith.addf %107, %131 : vector<8x32xf32>
    %133 = vector.extract_strided_slice %6 {offsets = [0, 20], sizes = [8, 4], strides = [1, 1]} : vector<8x96xf32> to vector<8x4xf32>
    %cst_68 = arith.constant 5.000000e-01 : f32
    %134 = vector.broadcast %cst_68 : f32 to vector<8x4xf32>
    %135 = arith.mulf %133, %134 : vector<8x4xf32>
    %136 = vector.extract_strided_slice %6 {offsets = [0, 52], sizes = [8, 4], strides = [1, 1]} : vector<8x96xf32> to vector<8x4xf32>
    %137 = vector.extract_strided_slice %6 {offsets = [0, 84], sizes = [8, 4], strides = [1, 1]} : vector<8x96xf32> to vector<8x4xf32>
    %138 = tpu.transpose %136, [1, 0] : vector<8x4xf32> -> vector<4x8xf32>
    %cst_69 = arith.constant dense<0.000000e+00> : vector<8x8xf32>
    %139 = tpu.matmul %135, %138, %cst_69 {dimension_numbers = #tpu.dot_dimension_numbers<[1], [0], [0], [1], [0, 0, 1, 1], [], []>} : vector<8x4xf32>, vector<4x8xf32>, vector<8x8xf32> -> vector<8x8xf32>
    %c0_70 = arith.constant 0 : index
    %c5 = arith.constant 5 : index
    %c0_71 = arith.constant 0 : index
    %c0_72 = arith.constant 0 : index
    %140 = vector.load %arg6[%c0_70, %c5, %c0_71, %c0_72] : memref<1x8x8x8xf32, #tpu.memory_space<vmem>>, vector<1x1x8x8xf32>
    %141 = vector.shape_cast %140 : vector<1x1x8x8xf32> to vector<8x8xf32>
    %142 = arith.addf %139, %141 : vector<8x8xf32>
    %cst_73 = arith.constant dense<0xFF800000> : vector<8xf32>
    %143 = vector.multi_reduction <maximumf>, %142, %cst_73 [1] : vector<8x8xf32> to vector<8xf32>
    %144 = vector.shape_cast %143 : vector<8xf32> to vector<8x1xf32>
    %145 = vector.broadcast %144 : vector<8x1xf32> to vector<8x8xf32>
    %146 = arith.subf %142, %145 : vector<8x8xf32>
    %147 = math.exp %146 : vector<8x8xf32>
    %cst_74 = arith.constant dense<0.000000e+00> : vector<8xf32>
    %148 = vector.multi_reduction <add>, %147, %cst_74 [1] : vector<8x8xf32> to vector<8xf32>
    %149 = vector.shape_cast %148 : vector<8xf32> to vector<8x1xf32>
    %cst_75 = arith.constant dense<0.000000e+00> : vector<8x4xf32>
    %150 = tpu.matmul %147, %137, %cst_75 {dimension_numbers = #tpu.dot_dimension_numbers<[1], [0], [0], [1], [0, 0, 1, 1], [], []>} : vector<8x8xf32>, vector<8x4xf32>, vector<8x4xf32> -> vector<8x4xf32>
    %151 = tpu.reciprocal %149 : vector<8x1xf32> -> vector<8x1xf32>
    %152 = vector.broadcast %151 : vector<8x1xf32> to vector<8x4xf32>
    %153 = arith.mulf %150, %152 : vector<8x4xf32>
    %c5_76 = arith.constant 5 : index
    %c0_77 = arith.constant 0 : index
    %c0_78 = arith.constant 0 : index
    %154 = vector.load %arg4[%c5_76, %c0_77, %c0_78] : memref<8x4x32xf32, #tpu.memory_space<vmem>>, vector<1x4x32xf32>
    %155 = vector.shape_cast %154 : vector<1x4x32xf32> to vector<4x32xf32>
    %cst_79 = arith.constant dense<0.000000e+00> : vector<8x32xf32>
    %156 = tpu.matmul %153, %155, %cst_79 {dimension_numbers = #tpu.dot_dimension_numbers<[1], [0], [0], [1], [0, 0, 1, 1], [], []>} : vector<8x4xf32>, vector<4x32xf32>, vector<8x32xf32> -> vector<8x32xf32>
    %157 = arith.addf %132, %156 : vector<8x32xf32>
    %158 = vector.extract_strided_slice %6 {offsets = [0, 24], sizes = [8, 4], strides = [1, 1]} : vector<8x96xf32> to vector<8x4xf32>
    %cst_80 = arith.constant 5.000000e-01 : f32
    %159 = vector.broadcast %cst_80 : f32 to vector<8x4xf32>
    %160 = arith.mulf %158, %159 : vector<8x4xf32>
    %161 = vector.extract_strided_slice %6 {offsets = [0, 56], sizes = [8, 4], strides = [1, 1]} : vector<8x96xf32> to vector<8x4xf32>
    %162 = vector.extract_strided_slice %6 {offsets = [0, 88], sizes = [8, 4], strides = [1, 1]} : vector<8x96xf32> to vector<8x4xf32>
    %163 = tpu.transpose %161, [1, 0] : vector<8x4xf32> -> vector<4x8xf32>
    %cst_81 = arith.constant dense<0.000000e+00> : vector<8x8xf32>
    %164 = tpu.matmul %160, %163, %cst_81 {dimension_numbers = #tpu.dot_dimension_numbers<[1], [0], [0], [1], [0, 0, 1, 1], [], []>} : vector<8x4xf32>, vector<4x8xf32>, vector<8x8xf32> -> vector<8x8xf32>
    %c0_82 = arith.constant 0 : index
    %c6 = arith.constant 6 : index
    %c0_83 = arith.constant 0 : index
    %c0_84 = arith.constant 0 : index
    %165 = vector.load %arg6[%c0_82, %c6, %c0_83, %c0_84] : memref<1x8x8x8xf32, #tpu.memory_space<vmem>>, vector<1x1x8x8xf32>
    %166 = vector.shape_cast %165 : vector<1x1x8x8xf32> to vector<8x8xf32>
    %167 = arith.addf %164, %166 : vector<8x8xf32>
    %cst_85 = arith.constant dense<0xFF800000> : vector<8xf32>
    %168 = vector.multi_reduction <maximumf>, %167, %cst_85 [1] : vector<8x8xf32> to vector<8xf32>
    %169 = vector.shape_cast %168 : vector<8xf32> to vector<8x1xf32>
    %170 = vector.broadcast %169 : vector<8x1xf32> to vector<8x8xf32>
    %171 = arith.subf %167, %170 : vector<8x8xf32>
    %172 = math.exp %171 : vector<8x8xf32>
    %cst_86 = arith.constant dense<0.000000e+00> : vector<8xf32>
    %173 = vector.multi_reduction <add>, %172, %cst_86 [1] : vector<8x8xf32> to vector<8xf32>
    %174 = vector.shape_cast %173 : vector<8xf32> to vector<8x1xf32>
    %cst_87 = arith.constant dense<0.000000e+00> : vector<8x4xf32>
    %175 = tpu.matmul %172, %162, %cst_87 {dimension_numbers = #tpu.dot_dimension_numbers<[1], [0], [0], [1], [0, 0, 1, 1], [], []>} : vector<8x8xf32>, vector<8x4xf32>, vector<8x4xf32> -> vector<8x4xf32>
    %176 = tpu.reciprocal %174 : vector<8x1xf32> -> vector<8x1xf32>
    %177 = vector.broadcast %176 : vector<8x1xf32> to vector<8x4xf32>
    %178 = arith.mulf %175, %177 : vector<8x4xf32>
    %c6_88 = arith.constant 6 : index
    %c0_89 = arith.constant 0 : index
    %c0_90 = arith.constant 0 : index
    %179 = vector.load %arg4[%c6_88, %c0_89, %c0_90] : memref<8x4x32xf32, #tpu.memory_space<vmem>>, vector<1x4x32xf32>
    %180 = vector.shape_cast %179 : vector<1x4x32xf32> to vector<4x32xf32>
    %cst_91 = arith.constant dense<0.000000e+00> : vector<8x32xf32>
    %181 = tpu.matmul %178, %180, %cst_91 {dimension_numbers = #tpu.dot_dimension_numbers<[1], [0], [0], [1], [0, 0, 1, 1], [], []>} : vector<8x4xf32>, vector<4x32xf32>, vector<8x32xf32> -> vector<8x32xf32>
    %182 = arith.addf %157, %181 : vector<8x32xf32>
    %183 = vector.extract_strided_slice %6 {offsets = [0, 28], sizes = [8, 4], strides = [1, 1]} : vector<8x96xf32> to vector<8x4xf32>
    %cst_92 = arith.constant 5.000000e-01 : f32
    %184 = vector.broadcast %cst_92 : f32 to vector<8x4xf32>
    %185 = arith.mulf %183, %184 : vector<8x4xf32>
    %186 = vector.extract_strided_slice %6 {offsets = [0, 60], sizes = [8, 4], strides = [1, 1]} : vector<8x96xf32> to vector<8x4xf32>
    %187 = vector.extract_strided_slice %6 {offsets = [0, 92], sizes = [8, 4], strides = [1, 1]} : vector<8x96xf32> to vector<8x4xf32>
    %188 = tpu.transpose %186, [1, 0] : vector<8x4xf32> -> vector<4x8xf32>
    %cst_93 = arith.constant dense<0.000000e+00> : vector<8x8xf32>
    %189 = tpu.matmul %185, %188, %cst_93 {dimension_numbers = #tpu.dot_dimension_numbers<[1], [0], [0], [1], [0, 0, 1, 1], [], []>} : vector<8x4xf32>, vector<4x8xf32>, vector<8x8xf32> -> vector<8x8xf32>
    %c0_94 = arith.constant 0 : index
    %c7 = arith.constant 7 : index
    %c0_95 = arith.constant 0 : index
    %c0_96 = arith.constant 0 : index
    %190 = vector.load %arg6[%c0_94, %c7, %c0_95, %c0_96] : memref<1x8x8x8xf32, #tpu.memory_space<vmem>>, vector<1x1x8x8xf32>
    %191 = vector.shape_cast %190 : vector<1x1x8x8xf32> to vector<8x8xf32>
    %192 = arith.addf %189, %191 : vector<8x8xf32>
    %cst_97 = arith.constant dense<0xFF800000> : vector<8xf32>
    %193 = vector.multi_reduction <maximumf>, %192, %cst_97 [1] : vector<8x8xf32> to vector<8xf32>
    %194 = vector.shape_cast %193 : vector<8xf32> to vector<8x1xf32>
    %195 = vector.broadcast %194 : vector<8x1xf32> to vector<8x8xf32>
    %196 = arith.subf %192, %195 : vector<8x8xf32>
    %197 = math.exp %196 : vector<8x8xf32>
    %cst_98 = arith.constant dense<0.000000e+00> : vector<8xf32>
    %198 = vector.multi_reduction <add>, %197, %cst_98 [1] : vector<8x8xf32> to vector<8xf32>
    %199 = vector.shape_cast %198 : vector<8xf32> to vector<8x1xf32>
    %cst_99 = arith.constant dense<0.000000e+00> : vector<8x4xf32>
    %200 = tpu.matmul %197, %187, %cst_99 {dimension_numbers = #tpu.dot_dimension_numbers<[1], [0], [0], [1], [0, 0, 1, 1], [], []>} : vector<8x8xf32>, vector<8x4xf32>, vector<8x4xf32> -> vector<8x4xf32>
    %201 = tpu.reciprocal %199 : vector<8x1xf32> -> vector<8x1xf32>
    %202 = vector.broadcast %201 : vector<8x1xf32> to vector<8x4xf32>
    %203 = arith.mulf %200, %202 : vector<8x4xf32>
    %c7_100 = arith.constant 7 : index
    %c0_101 = arith.constant 0 : index
    %c0_102 = arith.constant 0 : index
    %204 = vector.load %arg4[%c7_100, %c0_101, %c0_102] : memref<8x4x32xf32, #tpu.memory_space<vmem>>, vector<1x4x32xf32>
    %205 = vector.shape_cast %204 : vector<1x4x32xf32> to vector<4x32xf32>
    %cst_103 = arith.constant dense<0.000000e+00> : vector<8x32xf32>
    %206 = tpu.matmul %203, %205, %cst_103 {dimension_numbers = #tpu.dot_dimension_numbers<[1], [0], [0], [1], [0, 0, 1, 1], [], []>} : vector<8x4xf32>, vector<4x32xf32>, vector<8x32xf32> -> vector<8x32xf32>
    %207 = arith.addf %182, %206 : vector<8x32xf32>
    %c0_104 = arith.constant 0 : index
    %c0_105 = arith.constant 0 : index
    %208 = vector.load %arg5[%c0_104, %c0_105] : memref<1x32xf32, #tpu.memory_space<vmem>>, vector<1x32xf32>
    %209 = vector.broadcast %208 : vector<1x32xf32> to vector<8x32xf32>
    %210 = arith.addf %207, %209 : vector<8x32xf32>
    %c0_106 = arith.constant 0 : index
    %c0_107 = arith.constant 0 : index
    %c0_108 = arith.constant 0 : index
    %211 = vector.load %arg7[%c0_106, %c0_107, %c0_108] : memref<1x8x32xf32, #tpu.memory_space<vmem>>, vector<1x8x32xf32>
    %212 = vector.shape_cast %211 : vector<1x8x32xf32> to vector<8x32xf32>
    %213 = vector.shape_cast %210 : vector<8x32xf32> to vector<1x8x32xf32>
    tpu.vector_store %arg7[%c0_106, %c0_107, %c0_108], %213 {strides = array<i32>} : memref<1x8x32xf32, #tpu.memory_space<vmem>>, vector<1x8x32xf32>,
    return
  }
  func.func @transform_0(%arg0: i32) -> (i32, i32, i32) {
    %c0_i32 = arith.constant 0 : i32
    %c0_i32_0 = arith.constant 0 : i32
    %c0_i32_1 = arith.constant 0 : i32
    return %arg0, %c0_i32, %c0_i32_0 : i32, i32, i32
  }
  func.func @transform_1(%arg0: i32) -> (i32, i32) {
    %c0_i32 = arith.constant 0 : i32
    %c0_i32_0 = arith.constant 0 : i32
    %c0_i32_1 = arith.constant 0 : i32
    return %c0_i32, %c0_i32_0 : i32, i32
  }
  func.func @transform_2(%arg0: i32) -> (i32, i32) {
    %c0_i32 = arith.constant 0 : i32
    %c0_i32_0 = arith.constant 0 : i32
    %c0_i32_1 = arith.constant 0 : i32
    return %c0_i32, %c0_i32_0 : i32, i32
  }
  func.func @transform_3(%arg0: i32) -> (i32, i32, i32) {
    %c0_i32 = arith.constant 0 : i32
    %c0_i32_0 = arith.constant 0 : i32
    %c0_i32_1 = arith.constant 0 : i32
    %c0_i32_2 = arith.constant 0 : i32
    return %c0_i32, %c0_i32_0, %c0_i32_1 : i32, i32, i32
  }
  func.func @transform_4(%arg0: i32) -> (i32, i32) {
    %c0_i32 = arith.constant 0 : i32
    %c0_i32_0 = arith.constant 0 : i32
    %c0_i32_1 = arith.constant 0 : i32
    return %c0_i32, %c0_i32_0 : i32, i32
  }
  func.func @transform_5(%arg0: i32) -> (i32, i32, i32, i32) {
    %c0_i32 = arith.constant 0 : i32
    %c0_i32_0 = arith.constant 0 : i32
    %c0_i32_1 = arith.constant 0 : i32
    %c0_i32_2 = arith.constant 0 : i32
    return %arg0, %c0_i32, %c0_i32_0, %c0_i32_1 : i32, i32, i32, i32
  }
  func.func @transform_6(%arg0: i32) -> (i32, i32, i32) {
    %c0_i32 = arith.constant 0 : i32
    %c0_i32_0 = arith.constant 0 : i32
    %c0_i32_1 = arith.constant 0 : i32
    return %arg0, %c0_i32, %c0_i32_0 : i32, i32, i32
  }
}

</mosaic_0001>

<llo_original>
// kernel: tpu_custom_call.1
$region0: #{tpu_custom_call.1}
  #allocation0 [shape = 'u32[]', space=smem, size = 0x4, offset = 0x4, fixed_abs, tag = 'smem constant byte address 0x4 - core index']
  #allocation1 [shape = 'u32[72,128]{1,0:T(1,128)}', space=vmem, size = 0x9000, scoped, tag = 'internal scratch']
  %s0 = inlined_call_operand.hbm [shape: f32[2,8,32], index: 0, kind: input, shape index: {}]
  %s1 = inlined_call_operand.hbm [shape: f32[32,96], index: 1, kind: input, shape index: {}]
  %s2 = inlined_call_operand.vmem [shape: f32[1,96], index: 2, kind: input, shape index: {}]
  %s3 = inlined_call_operand.hbm [shape: f32[8,4,32], index: 3, kind: input, shape index: {}]
  %s4 = inlined_call_operand.vmem [shape: f32[1,32], index: 4, kind: input, shape index: {}]
  %s5 = inlined_call_operand.hbm [shape: f32[2,8,8,8], index: 5, kind: input, shape index: {}]
  %s6 = inlined_call_operand.hbm [shape: f32[2,8,32], index: 6, kind: output, shape index: {}]
  %s7 = sld [smem:[#allocation0]]
  $region73: #{tpu_custom_call.1} parent=0
    _
  %s9 = ssub.s32 1, %s7
  %s10 = scalar_select 0, %s9, %s7
  $region1: #{tpu_custom_call.1} parent=0
    #allocation2 [shape = 'u8[8192]{0}', space=vmem, size = 0x2000, scoped, tag = 'input window, operand 0']
    #allocation3 [shape = 's32[2]{0}', space=sflag, size = 0x8, scoped, tag = 'scoped memory for tpu_custom_call.1']
    #allocation4 [shape = 's32[2]{0}', space=sflag, size = 0x8, scoped, tag = 'scoped memory for tpu_custom_call.1']
    #allocation5 [shape = 'u8[16384]{0}', space=vmem, size = 0x4000, scoped, tag = 'input window, operand 1, single buffered']
    #allocation6 [shape = 's32[1]{0}', space=sflag, size = 0x4, scoped, tag = 'scoped memory for tpu_custom_call.1']
    #allocation7 [shape = 'u8[16384]{0}', space=vmem, size = 0x4000, scoped, tag = 'input window, operand 3, single buffered']
    #allocation8 [shape = 'u8[65536]{0}', space=vmem, size = 0x10000, scoped, tag = 'input window, operand 5']
    #allocation9 [shape = 's32[2]{0}', space=sflag, size = 0x8, scoped, tag = 'scoped memory for tpu_custom_call.1']
    #allocation10 [shape = 'u8[8192]{0}', space=vmem, size = 0x2000, scoped, tag = 'output window, operand 0']
    %11 = vsyncpa [#allocation3], 0
    %s12 = scalar_lea.sflag [#allocation3], 1
    %13 = vsyncpa %s12, 0
    %14 = vsyncpa [#allocation6], 0
    %15 = vsyncpa [#allocation9], 0
    %s16 = scalar_lea.sflag [#allocation9], 1
    %17 = vsyncpa %s16, 0
    %18 = vsyncpa [#allocation4], 0
    %s19 = scalar_lea.sflag [#allocation4], 1
    %20 = vsyncpa %s19, 0
    loop: start=0, step=1, limit=4
    $region2: #{tpu_custom_call.1} parent=1 // loop_pre_header
      _
    $region3: #{tpu_custom_call.1} parent=1 // loop_header
      %s22 = sphi 0, %s26
      %p23 = scmp.ge.s32.totalorder %s22, 4
      %s32 = sphi 0, %s34
      %s35 = sphi 0, %s32
      %s36 = sphi 0, %s35
      %s52 = sphi 0, %s36
      %s56 = sphi 0, %s56
      %s58 = sphi 0, %s56
      %s59 = sphi 0, %s58
      %s73 = sphi 0, %s59
      %s77 = sphi 0, %s77
      %s79 = sphi 0, %s77
      %s80 = sphi 0, %s79
      %s94 = sphi 0, %s80
      %s98 = sphi 0, %s98
      %s100 = sphi 0, %s98
      %s101 = sphi 0, %s100
      %s115 = sphi 0, %s101
      %s119 = sphi 0, %s119
      %s121 = sphi 0, %s119
      %s122 = sphi 0, %s121
      %s136 = sphi 0, %s122
      %s142 = sphi 0, %s144
      %s145 = sphi 0, %s142
      %s146 = sphi 0, %s145
      %s162 = sphi 0, %s146
      %s168 = sphi 0, %s170
      %s171 = sphi 0, %s168
      %s172 = sphi 0, %s171
      %s188 = sphi 0, %s172
    $region4: #{tpu_custom_call.1} parent=1 // loop_header_branch
      %25 = sbr.rel (%p23) target = $region8
    $region5: #{tpu_custom_call.1} parent=1 // loop_body
      %s27 = ssub.s32 %s22, 1
      %s28 = ssub.s32 %s22, 2
      %s29 = sadd.s32 %s22, 1
      %s30 = ssub.s32 %s22, %s29
      %p31 = scmp.eq.s32.totalorder %s30, 0
      %s33 = sadd.s32 %s32, 1
      %s34 = scalar_select %p31, %s32, %s33
      %p37 = pneg %p31
      %p38 = scmp.eq.s32.totalorder %s22, 1
      %p39 = por %p37, %p38
      %p40 = scmp.ne.s32.totalorder %s32, %s35
      %p41 = scmp.eq.s32.totalorder %s22, 0
      %p42 = por %p40, %p41
      %p43 = scmp.ne.s32.totalorder %s32, %s35
      %p44 = scmp.eq.s32.totalorder %s27, 1
      %p45 = por %p43, %p44
      %p46 = scmp.ne.s32.totalorder %s35, %s36
      %p47 = scmp.eq.s32.totalorder %s27, 0
      %p48 = por %p46, %p47
      %p49 = scmp.ne.s32.totalorder %s35, %s36
      %p50 = scmp.eq.s32.totalorder %s28, 1
      %p51 = por %p49, %p50
      %p53 = scmp.ne.s32.totalorder %s36, %s52
      %p54 = scmp.eq.s32.totalorder %s28, 0
      %p55 = por %p53, %p54
      %s57 = sadd.s32 %s56, 1
      %p60 = scmp.eq.s32.totalorder %s22, 1
      %p61 = scmp.ne.s32.totalorder %s56, %s58
      %p62 = scmp.eq.s32.totalorder %s22, 0
      %p63 = por %p61, %p62
      %p64 = scmp.ne.s32.totalorder %s56, %s58
      %p65 = scmp.eq.s32.totalorder %s27, 1
      %p66 = por %p64, %p65
      %p67 = scmp.ne.s32.totalorder %s58, %s59
      %p68 = scmp.eq.s32.totalorder %s27, 0
      %p69 = por %p67, %p68
      %p70 = scmp.ne.s32.totalorder %s58, %s59
      %p71 = scmp.eq.s32.totalorder %s28, 1
      %p72 = por %p70, %p71
      %p74 = scmp.ne.s32.totalorder %s59, %s73
      %p75 = scmp.eq.s32.totalorder %s28, 0
      %p76 = por %p74, %p75
      %s78 = sadd.s32 %s77, 1
      %p81 = scmp.eq.s32.totalorder %s22, 1
      %p82 = scmp.ne.s32.totalorder %s77, %s79
      %p83 = scmp.eq.s32.totalorder %s22, 0
      %p84 = por %p82, %p83
      %p85 = scmp.ne.s32.totalorder %s77, %s79
      %p86 = scmp.eq.s32.totalorder %s27, 1
      %p87 = por %p85, %p86
      %p88 = scmp.ne.s32.totalorder %s79, %s80
      %p89 = scmp.eq.s32.totalorder %s27, 0
      %p90 = por %p88, %p89
      %p91 = scmp.ne.s32.totalorder %s79, %s80
      %p92 = scmp.eq.s32.totalorder %s28, 1
      %p93 = por %p91, %p92
      %p95 = scmp.ne.s32.totalorder %s80, %s94
      %p96 = scmp.eq.s32.totalorder %s28, 0
      %p97 = por %p95, %p96
      %s99 = sadd.s32 %s98, 1
      %p102 = scmp.eq.s32.totalorder %s22, 1
      %p103 = scmp.ne.s32.totalorder %s98, %s100
      %p104 = scmp.eq.s32.totalorder %s22, 0
      %p105 = por %p103, %p104
      %p106 = scmp.ne.s32.totalorder %s98, %s100
      %p107 = scmp.eq.s32.totalorder %s27, 1
      %p108 = por %p106, %p107
      %p109 = scmp.ne.s32.totalorder %s100, %s101
      %p110 = scmp.eq.s32.totalorder %s27, 0
      %p111 = por %p109, %p110
      %p112 = scmp.ne.s32.totalorder %s100, %s101
      %p113 = scmp.eq.s32.totalorder %s28, 1
      %p114 = por %p112, %p113
      %p116 = scmp.ne.s32.totalorder %s101, %s115
      %p117 = scmp.eq.s32.totalorder %s28, 0
      %p118 = por %p116, %p117
      %s120 = sadd.s32 %s119, 1
      %p123 = scmp.eq.s32.totalorder %s22, 1
      %p124 = scmp.ne.s32.totalorder %s119, %s121
      %p125 = scmp.eq.s32.totalorder %s22, 0
      %p126 = por %p124, %p125
      %p127 = scmp.ne.s32.totalorder %s119, %s121
      %p128 = scmp.eq.s32.totalorder %s27, 1
      %p129 = por %p127, %p128
      %p130 = scmp.ne.s32.totalorder %s121, %s122
      %p131 = scmp.eq.s32.totalorder %s27, 0
      %p132 = por %p130, %p131
      %p133 = scmp.ne.s32.totalorder %s121, %s122
      %p134 = scmp.eq.s32.totalorder %s28, 1
      %p135 = por %p133, %p134
      %p137 = scmp.ne.s32.totalorder %s122, %s136
      %p138 = scmp.eq.s32.totalorder %s28, 0
      %p139 = por %p137, %p138
      %s140 = ssub.s32 %s22, %s29
      %p141 = scmp.eq.s32.totalorder %s140, 0
      %s143 = sadd.s32 %s142, 1
      %s144 = scalar_select %p141, %s142, %s143
      %p147 = pneg %p141
      %p148 = scmp.eq.s32.totalorder %s22, 1
      %p149 = por %p147, %p148
      %p150 = scmp.ne.s32.totalorder %s142, %s145
      %p151 = scmp.eq.s32.totalorder %s22, 0
      %p152 = por %p150, %p151
      %p153 = scmp.ne.s32.totalorder %s142, %s145
      %p154 = scmp.eq.s32.totalorder %s27, 1
      %p155 = por %p153, %p154
      %p156 = scmp.ne.s32.totalorder %s145, %s146
      %p157 = scmp.eq.s32.totalorder %s27, 0
      %p158 = por %p156, %p157
      %p159 = scmp.ne.s32.totalorder %s145, %s146
      %p160 = scmp.eq.s32.totalorder %s28, 1
      %p161 = por %p159, %p160
      %p163 = scmp.ne.s32.totalorder %s146, %s162
      %p164 = scmp.eq.s32.totalorder %s28, 0
      %p165 = por %p163, %p164
      %s166 = ssub.s32 %s22, %s29
      %p167 = scmp.eq.s32.totalorder %s166, 0
      %s169 = sadd.s32 %s168, 1
      %s170 = scalar_select %p167, %s168, %s169
      %p173 = pneg %p167
      %p174 = scmp.eq.s32.totalorder %s22, 1
      %p175 = por %p173, %p174
      %p176 = scmp.ne.s32.totalorder %s168, %s171
      %p177 = scmp.eq.s32.totalorder %s22, 0
      %p178 = por %p176, %p177
      %p179 = scmp.ne.s32.totalorder %s168, %s171
      %p180 = scmp.eq.s32.totalorder %s27, 1
      %p181 = por %p179, %p180
      %p182 = scmp.ne.s32.totalorder %s171, %s172
      %p183 = scmp.eq.s32.totalorder %s27, 0
      %p184 = por %p182, %p183
      %p185 = scmp.ne.s32.totalorder %s171, %s172
      %p186 = scmp.eq.s32.totalorder %s28, 1
      %p187 = por %p185, %p186
      %p189 = scmp.ne.s32.totalorder %s172, %s188
      %p190 = scmp.eq.s32.totalorder %s28, 0
      %p191 = por %p189, %p190
      %p192 = scmp.le.s32.totalorder 1, %s22
      %p193 = scmp.lt.s32.totalorder %s22, 3
      %p194 = pnand %p192, %p193
      %p195 = pneg %p194
      // Predicated region
      $region9: #{tpu_custom_call.1} parent=5 // pred_check
        _
      $region10: #{tpu_custom_call.1} parent=5 // pred_check_branch
        %197 = sbr.rel (%p194) target = $region12
      $region11: #{tpu_custom_call.1} parent=5 // pred_region
        %s198 = ssub.s32 %s22, 1
        // Predicated region
        $region13: #{tpu_custom_call.1} parent=11 // pred_check
          %p199 = pneg %p69
        $region14: #{tpu_custom_call.1} parent=11 // pred_check_branch
          %201 = sbr.rel (%p199) target = $region16
        $region15: #{tpu_custom_call.1} parent=11 // pred_region
          %203 = vsyncadd [#allocation6], 0
          %s204 = sshll.u32 %s1, 4
          %s205 = int_to_ptr.hbm [resolvable:$true] %s204
          %s206 = sshll.u32 [#allocation5], 4
          %s207 = int_to_ptr.vmem [resolvable:$true] %s206
          %212 = dma.hbm_to_vmem [thread:$0]  %s205, 512, %s207, [#allocation6], 128, 128, 8
        $region16: #{tpu_custom_call.1} parent=11 // pred_fallthru
          _
        // Predicated region
        $region17: #{tpu_custom_call.1} parent=11 // pred_check
          %p213 = pneg %p90
        $region18: #{tpu_custom_call.1} parent=11 // pred_check_branch
          %215 = sbr.rel (%p213) target = $region20
        $region19: #{tpu_custom_call.1} parent=11 // pred_region
          _
        $region20: #{tpu_custom_call.1} parent=11 // pred_fallthru
          _
        // Predicated region
        $region21: #{tpu_custom_call.1} parent=11 // pred_check
          %p216 = pneg %p111
        $region22: #{tpu_custom_call.1} parent=11 // pred_check_branch
          %218 = sbr.rel (%p216) target = $region24
        $region23: #{tpu_custom_call.1} parent=11 // pred_region
          %220 = vsyncadd [#allocation6], 0
          %s221 = sshll.u32 %s3, 4
          %s222 = int_to_ptr.hbm [resolvable:$true] %s221
          %s223 = sshll.u32 [#allocation7], 4
          %s224 = int_to_ptr.vmem [resolvable:$true] %s223
          %229 = dma.hbm_to_vmem [thread:$0]  %s222, 512, %s224, [#allocation6], 64, 64, 4
        $region24: #{tpu_custom_call.1} parent=11 // pred_fallthru
          _
        // Predicated region
        $region25: #{tpu_custom_call.1} parent=11 // pred_check
          %p230 = pneg %p132
        $region26: #{tpu_custom_call.1} parent=11 // pred_check_branch
          %232 = sbr.rel (%p230) target = $region28
        $region27: #{tpu_custom_call.1} parent=11 // pred_region
          _
        $region28: #{tpu_custom_call.1} parent=11 // pred_fallthru
          _
      $region12: #{tpu_custom_call.1} parent=5 // pred_fallthru
        _
      %p233 = scmp.lt.s32.totalorder %s22, 2
      // Predicated region
      $region29: #{tpu_custom_call.1} parent=5 // pred_check
        %p234 = pneg %p233
      $region30: #{tpu_custom_call.1} parent=5 // pred_check_branch
        %236 = sbr.rel (%p234) target = $region32
      $region31: #{tpu_custom_call.1} parent=5 // pred_region
        // Predicated region
        $region33: #{tpu_custom_call.1} parent=31 // pred_check
          %p237 = pneg %p42
        $region34: #{tpu_custom_call.1} parent=31 // pred_check_branch
          %239 = sbr.rel (%p237) target = $region36
        $region35: #{tpu_custom_call.1} parent=31 // pred_region
          %s240 = sand.u32 %s32, 1
          %s241 = scalar_lea.sflag [#allocation3], %s240
          %s242 = sand.u32 %s32, 1
          %s243 = smul.addr %s242, 8
          %s244 = scalar_lea.vmem [#allocation2], %s243
          %246 = vsyncadd %s241, 0
          %s247 = smul.addr %s22, 8
          %s248 = scalar_lea.hbm %s0, %s247
          %s250 = sshll.u32 %s248, 4
          %s251 = int_to_ptr.hbm [resolvable:$true] %s250
          %s252 = sshll.u32 %s244, 4
          %s253 = int_to_ptr.vmem [resolvable:$true] %s252
          %255 = dma.hbm_to_vmem [thread:$0]  %s251, 128, %s253, %s241
        $region36: #{tpu_custom_call.1} parent=31 // pred_fallthru
          _
        // Predicated region
        $region37: #{tpu_custom_call.1} parent=31 // pred_check
          %p256 = pneg %p152
        $region38: #{tpu_custom_call.1} parent=31 // pred_check_branch
          %258 = sbr.rel (%p256) target = $region40
        $region39: #{tpu_custom_call.1} parent=31 // pred_region
          %s259 = sand.u32 %s142, 1
          %s260 = scalar_lea.sflag [#allocation9], %s259
          %s261 = sand.u32 %s142, 1
          %s262 = smul.addr %s261, 64
          %s263 = scalar_lea.vmem [#allocation8], %s262
          %265 = vsyncadd %s260, 0
          %s266 = smul.addr %s22, 8
          %s267 = smul.addr %s266, 8
          %s268 = scalar_lea.hbm %s5, %s267
          %s269 = sshll.u32 %s268, 4
          %s270 = int_to_ptr.hbm [resolvable:$true] %s269
          %s271 = sshll.u32 %s263, 4
          %s272 = int_to_ptr.vmem [resolvable:$true] %s271
          %277 = dma.hbm_to_vmem [thread:$0]  %s270, 1024, %s272, %s260, 128, 128, 8
        $region40: #{tpu_custom_call.1} parent=31 // pred_fallthru
          _
      $region32: #{tpu_custom_call.1} parent=5 // pred_fallthru
        _
      %p278 = scmp.le.s32.totalorder 1, %s22
      %p279 = scmp.lt.s32.totalorder %s22, 3
      %p280 = pnand %p278, %p279
      %p281 = pneg %p280
      // Predicated region
      $region41: #{tpu_custom_call.1} parent=5 // pred_check
        _
      $region42: #{tpu_custom_call.1} parent=5 // pred_check_branch
        %283 = sbr.rel (%p280) target = $region44
      $region43: #{tpu_custom_call.1} parent=5 // pred_region
        %s284 = ssub.s32 %s22, 1
        %s285 = sand.u32 %s35, 1
        %s286 = scalar_lea.sflag [#allocation3], %s285
        %s287 = sand.u32 %s35, 1
        %s288 = smul.addr %s287, 8
        %s289 = scalar_lea.vmem [#allocation2], %s288
        // Predicated region
        $region45: #{tpu_custom_call.1} parent=43 // pred_check
          %p290 = pneg %p48
        $region46: #{tpu_custom_call.1} parent=43 // pred_check_branch
          %292 = sbr.rel (%p290) target = $region48
        $region47: #{tpu_custom_call.1} parent=43 // pred_region
          %294 = dma.done %s286, 128
        $region48: #{tpu_custom_call.1} parent=43 // pred_fallthru
          _
        // Predicated region
        $region49: #{tpu_custom_call.1} parent=43 // pred_check
          %p295 = pneg %p69
        $region50: #{tpu_custom_call.1} parent=43 // pred_check_branch
          %297 = sbr.rel (%p295) target = $region52
        $region51: #{tpu_custom_call.1} parent=43 // pred_region
          %299 = dma.done [#allocation6], 512
        $region52: #{tpu_custom_call.1} parent=43 // pred_fallthru
          _
        // Predicated region
        $region53: #{tpu_custom_call.1} parent=43 // pred_check
          %p300 = pneg %p111
        $region54: #{tpu_custom_call.1} parent=43 // pred_check_branch
          %302 = sbr.rel (%p300) target = $region56
        $region55: #{tpu_custom_call.1} parent=43 // pred_region
          %304 = dma.done [#allocation6], 512
        $region56: #{tpu_custom_call.1} parent=43 // pred_fallthru
          _
        %s305 = sand.u32 %s145, 1
        %s306 = scalar_lea.sflag [#allocation9], %s305
        %s307 = sand.u32 %s145, 1
        %s308 = smul.addr %s307, 64
        %s309 = scalar_lea.vmem [#allocation8], %s308
        // Predicated region
        $region57: #{tpu_custom_call.1} parent=43 // pred_check
          %p310 = pneg %p158
        $region58: #{tpu_custom_call.1} parent=43 // pred_check_branch
          %312 = sbr.rel (%p310) target = $region60
        $region59: #{tpu_custom_call.1} parent=43 // pred_region
          %314 = dma.done %s306, 1024
        $region60: #{tpu_custom_call.1} parent=43 // pred_fallthru
          _
        %s315 = sand.u32 %s35, 1
        %s316 = scalar_lea.sflag [#allocation3], %s315
        %s317 = sand.u32 %s35, 1
        %s318 = smul.addr %s317, 8
        %s319 = scalar_lea.vmem [#allocation2], %s318
        %p320 = pneg %p48
        %p321 = pneg %p45
        %p322 = pneg %p69
        %p323 = pneg %p66
        %p324 = pneg %p90
        %p325 = pneg %p87
        %p326 = pneg %p111
        %p327 = pneg %p108
        %p328 = pneg %p132
        %p329 = pneg %p129
        %s330 = sand.u32 %s145, 1
        %s331 = scalar_lea.sflag [#allocation9], %s330
        %s332 = sand.u32 %s145, 1
        %s333 = smul.addr %s332, 64
        %s334 = scalar_lea.vmem [#allocation8], %s333
        %p335 = pneg %p158
        %p336 = pneg %p155
        %p337 = pneg %p184
        %p338 = pneg %p181
        %s339 = sand.u32 %s171, 1
        %s340 = scalar_lea.sflag [#allocation4], %s339
        %s341 = sand.u32 %s171, 1
        %s342 = smul.addr %s341, 8
        %s343 = scalar_lea.vmem [#allocation10], %s342
        %v344 = vld [vmem:[%s289] sm:$0xff]
        %v345 = vld [vmem:[#allocation5] sm:$0xff]
        %v346 = vld [vmem:[#allocation5 + $0x8] sm:$0xff]
        %v347 = vld [vmem:[#allocation5 + $0x10] sm:$0xff]
        %v348 = vld [vmem:[#allocation5 + $0x18] sm:$0xff]
        %v349 = vld [vmem:[%s2] sm:$0x1]
        %v351 = vperm.slane %v349, 0
        %vm353 = vcmask 261120
        %v355 = vsel %vm353, %v344, 0
        %357 = vmatpush.msra.mxu0 0.0
        %358 = vmatpush.msra.mxu0 0.0
        %359 = vmatpush.msra.mxu0 0.0
        %360 = vmatpush.msra.mxu0 0.0
        %361 = vmatpush.msra.mxu0 0.0
        %362 = vmatpush.msra.mxu0 0.0
        %363 = vmatpush.msra.mxu0 0.0
        %364 = vmatpush.msra.mxu0 0.0
        %365 = vmatpush.msra.mxu0 0.0
        %366 = vmatpush.msra.mxu0 0.0
        %367 = vmatpush.msra.mxu0 0.0
        %368 = vmatpush.msra.mxu0 0.0
        %369 = vmatpush.msra.mxu0 %v348
        %370 = vmatpush.msra.mxu0 %v347
        %371 = vmatpush.msra.mxu0 %v346
        %372 = vmatpush.msra.mxu0 %v345
        %373 = vmatmul.f32.gmra.mxu0 %v355
        %v374 = vpop.f32.mrf.mxu0
        %v375 = vadd.f32 %v351, %v374
        %376 = vdwg.mxu0
        %v377 = vmul.f32 %v375, 0.5
        %v378 = vld [vmem:[%s309] sm:$0xff]
        %380 = vrot.lane.b32.xlu0 %v375, 96
        %v381 = vpop.permute.xlu0 %380
        %vm382 = vcmask 31744
        %v384 = vsel %vm382, %v377, 0
        %v386 = vsel %vm382, %v381, 0
        %388 = vmatpush.xpose.msra.mxu0 0.0
        %389 = vmatpush.xpose.msra.mxu0 0.0
        %390 = vmatpush.xpose.msra.mxu0 0.0
        %391 = vmatpush.xpose.msra.mxu0 0.0
        %392 = vmatpush.xpose.msra.mxu0 0.0
        %393 = vmatpush.xpose.msra.mxu0 0.0
        %394 = vmatpush.xpose.msra.mxu0 0.0
        %395 = vmatpush.xpose.msra.mxu0 0.0
        %396 = vmatpush.xpose.msra.mxu0 0.0
        %397 = vmatpush.xpose.msra.mxu0 0.0
        %398 = vmatpush.xpose.msra.mxu0 0.0
        %399 = vmatpush.xpose.msra.mxu0 0.0
        %400 = vmatpush.xpose.msra.mxu0 0.0
        %401 = vmatpush.xpose.msra.mxu0 0.0
        %402 = vmatpush.xpose.msra.mxu0 0.0
        %403 = vmatpush.xpose.msra.mxu0 %v386
        %404 = vmatmul.f32.gmra.mxu0 %v384
        %v405 = vpop.f32.mrf.mxu0
        %v406 = vadd.f32 %v378, %v405
        %407 = vdwg.mxu0
        %vm408 = vcmask 64512
        %v409 = vsel %vm408, %v406, -inf
        %410 = vmax.xlane.f32.xlu0 %v409
        %v411 = vpop.xlane.xlu0 %410
        %v412 = vsub.f32 %v406, %v411
        %v413 = vmul.f32 %v412, 1.442695
        %v414 = vpow.pop %v413
        %v415 = vsel %vm408, %v414, 0.0
        %416 = vadd.xlane.f32.xlu0 %v415
        %v417 = vpop.xlane.xlu0 %416
        %418 = vrot.lane.b32.xlu0 %v375, 64
        %v419 = vpop.permute.xlu0 %418
        %v422 = vsel %vm408, %v414, 0
        %424 = vmatpush.msra.mxu0 0.0
        %425 = vmatpush.msra.mxu0 0.0
        %426 = vmatpush.msra.mxu0 0.0
        %427 = vmatpush.msra.mxu0 0.0
        %428 = vmatpush.msra.mxu0 0.0
        %429 = vmatpush.msra.mxu0 0.0
        %430 = vmatpush.msra.mxu0 0.0
        %431 = vmatpush.msra.mxu0 0.0
        %432 = vmatpush.msra.mxu0 0.0
        %433 = vmatpush.msra.mxu0 0.0
        %434 = vmatpush.msra.mxu0 0.0
        %435 = vmatpush.msra.mxu0 0.0
        %436 = vmatpush.msra.mxu0 0.0
        %437 = vmatpush.msra.mxu0 0.0
        %438 = vmatpush.msra.mxu0 0.0
        %439 = vmatpush.msra.mxu0 %v419
        %440 = vmatmul.f32.gmra.mxu0 %v422
        %v441 = vpop.f32.mrf.mxu0
        %v442 = vadd.f32 0.0, %v441
        %443 = vdwg.mxu0
        %v444 = vrcp.pop %v417
        %v445 = vmul.f32 %v417, %v444
        %v446 = vsub.f32 1.0, %v445
        %v447 = vmul.f32 %v444, %v446
        %v448 = vadd.f32 %v444, %v447
        %vm449 = vweird.f32 %v417
        %vm450 = vweird.f32 %v444
        %vm451 = vmor %vm449, %vm450
        %v452 = vsel %vm451, %v444, %v448
        %v453 = vand.u32 2147483647, %v417
        %vm454 = vcmp.eq.f32.partialorder %v453, 8.507059e+37
        %v455 = vand.u32 %v417, 2147483648
        %v456 = vor.u32 1.1754944e-38, %v455
        %v457 = vsel %vm454, %v456, %v452
        %v458 = vmul.f32 %v442, %v457
        %v459 = vld [vmem:[#allocation7] sm:$0xf]
        %s460 = scalar_lea.vmem %s309, 8 [#allocation8]
        %v461 = vld [vmem:[%s460] sm:$0xff]
        %462 = vrot.lane.b32.xlu0 %v377, 124
        %v463 = vpop.permute.xlu0 %462
        %464 = vrot.lane.b32.xlu0 %v375, 92
        %v465 = vpop.permute.xlu0 %464
        %v466 = vsel %vm382, %v463, 0
        %v468 = vsel %vm382, %v465, 0
        %470 = vmatpush.xpose.msra.mxu0 0.0
        %471 = vmatpush.xpose.msra.mxu0 0.0
        %472 = vmatpush.xpose.msra.mxu0 0.0
        %473 = vmatpush.xpose.msra.mxu0 0.0
        %474 = vmatpush.xpose.msra.mxu0 0.0
        %475 = vmatpush.xpose.msra.mxu0 0.0
        %476 = vmatpush.xpose.msra.mxu0 0.0
        %477 = vmatpush.xpose.msra.mxu0 0.0
        %478 = vmatpush.xpose.msra.mxu0 0.0
        %479 = vmatpush.xpose.msra.mxu0 0.0
        %480 = vmatpush.xpose.msra.mxu0 0.0
        %481 = vmatpush.xpose.msra.mxu0 0.0
        %482 = vmatpush.xpose.msra.mxu0 0.0
        %483 = vmatpush.xpose.msra.mxu0 0.0
        %484 = vmatpush.xpose.msra.mxu0 0.0
        %485 = vmatpush.xpose.msra.mxu0 %v468
        %486 = vmatmul.f32.gmra.mxu0 %v466
        %v487 = vpop.f32.mrf.mxu0
        %v488 = vadd.f32 %v461, %v487
        %489 = vdwg.mxu0
        %v490 = vsel %vm408, %v488, -inf
        %491 = vmax.xlane.f32.xlu0 %v490
        %v492 = vpop.xlane.xlu0 %491
        %v493 = vsub.f32 %v488, %v492
        %v494 = vmul.f32 %v493, 1.442695
        %v495 = vpow.pop %v494
        %v496 = vsel %vm408, %v495, 0.0
        %497 = vadd.xlane.f32.xlu0 %v496
        %v498 = vpop.xlane.xlu0 %497
        %499 = vrot.lane.b32.xlu0 %v375, 60
        %v500 = vpop.permute.xlu0 %499
        %v503 = vsel %vm408, %v495, 0
        %505 = vmatpush.msra.mxu0 0.0
        %506 = vmatpush.msra.mxu0 0.0
        %507 = vmatpush.msra.mxu0 0.0
        %508 = vmatpush.msra.mxu0 0.0
        %509 = vmatpush.msra.mxu0 0.0
        %510 = vmatpush.msra.mxu0 0.0
        %511 = vmatpush.msra.mxu0 0.0
        %512 = vmatpush.msra.mxu0 0.0
        %513 = vmatpush.msra.mxu0 0.0
        %514 = vmatpush.msra.mxu0 0.0
        %515 = vmatpush.msra.mxu0 0.0
        %516 = vmatpush.msra.mxu0 0.0
        %517 = vmatpush.msra.mxu0 0.0
        %518 = vmatpush.msra.mxu0 0.0
        %519 = vmatpush.msra.mxu0 0.0
        %520 = vmatpush.msra.mxu0 %v500
        %521 = vmatmul.f32.gmra.mxu0 %v503
        %v522 = vpop.f32.mrf.mxu0
        %v523 = vadd.f32 0.0, %v522
        %524 = vdwg.mxu0
        %v525 = vrcp.pop %v498
        %v526 = vmul.f32 %v498, %v525
        %v527 = vsub.f32 1.0, %v526
        %v528 = vmul.f32 %v525, %v527
        %v529 = vadd.f32 %v525, %v528
        %vm530 = vweird.f32 %v498
        %vm531 = vweird.f32 %v525
        %vm532 = vmor %vm530, %vm531
        %v533 = vsel %vm532, %v525, %v529
        %v534 = vand.u32 2147483647, %v498
        %vm535 = vcmp.eq.f32.partialorder %v534, 8.507059e+37
        %v536 = vand.u32 %v498, 2147483648
        %v537 = vor.u32 1.1754944e-38, %v536
        %v538 = vsel %vm535, %v537, %v533
        %v539 = vmul.f32 %v523, %v538
        %s540 = scalar_lea.vmem [#allocation7], 4
        %v541 = vld [vmem:[%s540] sm:$0xf]
        %v543 = vsel %vm382, %v539, 0
        %vm545 = vcmask 1043456
        %v547 = vsel %vm545, %v541, 0
        %549 = vmatpush.msra.mxu0 0.0
        %550 = vmatpush.msra.mxu0 0.0
        %551 = vmatpush.msra.mxu0 0.0
        %552 = vmatpush.msra.mxu0 0.0
        %553 = vmatpush.msra.mxu0 0.0
        %554 = vmatpush.msra.mxu0 0.0
        %555 = vmatpush.msra.mxu0 0.0
        %556 = vmatpush.msra.mxu0 0.0
        %557 = vmatpush.msra.mxu0 0.0
        %558 = vmatpush.msra.mxu0 0.0
        %559 = vmatpush.msra.mxu0 0.0
        %560 = vmatpush.msra.mxu0 0.0
        %561 = vmatpush.msra.mxu0 0.0
        %562 = vmatpush.msra.mxu0 0.0
        %563 = vmatpush.msra.mxu0 0.0
        %564 = vmatpush.msra.mxu0 %v547
        %565 = vmatmul.f32.gmra.mxu0 %v543
        %v566 = vpop.f32.mrf.mxu0
        %v567 = vadd.f32 0.0, %v566
        %568 = vdwg.mxu0
        %v570 = vsel %vm382, %v458, 0
        %v573 = vsel %vm545, %v459, 0
        %575 = vmatpush.msra.mxu0 0.0
        %576 = vmatpush.msra.mxu0 0.0
        %577 = vmatpush.msra.mxu0 0.0
        %578 = vmatpush.msra.mxu0 0.0
        %579 = vmatpush.msra.mxu0 0.0
        %580 = vmatpush.msra.mxu0 0.0
        %581 = vmatpush.msra.mxu0 0.0
        %582 = vmatpush.msra.mxu0 0.0
        %583 = vmatpush.msra.mxu0 0.0
        %584 = vmatpush.msra.mxu0 0.0
        %585 = vmatpush.msra.mxu0 0.0
        %586 = vmatpush.msra.mxu0 0.0
        %587 = vmatpush.msra.mxu0 0.0
        %588 = vmatpush.msra.mxu0 0.0
        %589 = vmatpush.msra.mxu0 0.0
        %590 = vmatpush.msra.mxu0 %v573
        %591 = vmatmul.f32.gmra.mxu0 %v570
        %v592 = vpop.f32.mrf.mxu0
        %v593 = vadd.f32 %v567, %v592
        %594 = vdwg.mxu0
        %s595 = scalar_lea.vmem %s309, 16 [#allocation8]
        %v596 = vld [vmem:[%s595] sm:$0xff]
        %597 = vrot.lane.b32.xlu0 %v377, 120
        %v598 = vpop.permute.xlu0 %597
        %599 = vrot.lane.b32.xlu0 %v375, 88
        %v600 = vpop.permute.xlu0 %599
        %v601 = vsel %vm382, %v598, 0
        %v603 = vsel %vm382, %v600, 0
        %605 = vmatpush.xpose.msra.mxu0 0.0
        %606 = vmatpush.xpose.msra.mxu0 0.0
        %607 = vmatpush.xpose.msra.mxu0 0.0
        %608 = vmatpush.xpose.msra.mxu0 0.0
        %609 = vmatpush.xpose.msra.mxu0 0.0
        %610 = vmatpush.xpose.msra.mxu0 0.0
        %611 = vmatpush.xpose.msra.mxu0 0.0
        %612 = vmatpush.xpose.msra.mxu0 0.0
        %613 = vmatpush.xpose.msra.mxu0 0.0
        %614 = vmatpush.xpose.msra.mxu0 0.0
        %615 = vmatpush.xpose.msra.mxu0 0.0
        %616 = vmatpush.xpose.msra.mxu0 0.0
        %617 = vmatpush.xpose.msra.mxu0 0.0
        %618 = vmatpush.xpose.msra.mxu0 0.0
        %619 = vmatpush.xpose.msra.mxu0 0.0
        %620 = vmatpush.xpose.msra.mxu0 %v603
        %621 = vmatmul.f32.gmra.mxu0 %v601
        %v622 = vpop.f32.mrf.mxu0
        %v623 = vadd.f32 %v596, %v622
        %624 = vdwg.mxu0
        %v625 = vsel %vm408, %v623, -inf
        %626 = vmax.xlane.f32.xlu0 %v625
        %v627 = vpop.xlane.xlu0 %626
        %v628 = vsub.f32 %v623, %v627
        %v629 = vmul.f32 %v628, 1.442695
        %v630 = vpow.pop %v629
        %v631 = vsel %vm408, %v630, 0.0
        %632 = vadd.xlane.f32.xlu0 %v631
        %v633 = vpop.xlane.xlu0 %632
        %634 = vrot.lane.b32.xlu0 %v375, 56
        %v635 = vpop.permute.xlu0 %634
        %v638 = vsel %vm408, %v630, 0
        %640 = vmatpush.msra.mxu0 0.0
        %641 = vmatpush.msra.mxu0 0.0
        %642 = vmatpush.msra.mxu0 0.0
        %643 = vmatpush.msra.mxu0 0.0
        %644 = vmatpush.msra.mxu0 0.0
        %645 = vmatpush.msra.mxu0 0.0
        %646 = vmatpush.msra.mxu0 0.0
        %647 = vmatpush.msra.mxu0 0.0
        %648 = vmatpush.msra.mxu0 0.0
        %649 = vmatpush.msra.mxu0 0.0
        %650 = vmatpush.msra.mxu0 0.0
        %651 = vmatpush.msra.mxu0 0.0
        %652 = vmatpush.msra.mxu0 0.0
        %653 = vmatpush.msra.mxu0 0.0
        %654 = vmatpush.msra.mxu0 0.0
        %655 = vmatpush.msra.mxu0 %v635
        %656 = vmatmul.f32.gmra.mxu0 %v638
        %v657 = vpop.f32.mrf.mxu0
        %v658 = vadd.f32 0.0, %v657
        %659 = vdwg.mxu0
        %v660 = vrcp.pop %v633
        %v661 = vmul.f32 %v633, %v660
        %v662 = vsub.f32 1.0, %v661
        %v663 = vmul.f32 %v660, %v662
        %v664 = vadd.f32 %v660, %v663
        %vm665 = vweird.f32 %v633
        %vm666 = vweird.f32 %v660
        %vm667 = vmor %vm665, %vm666
        %v668 = vsel %vm667, %v660, %v664
        %v669 = vand.u32 2147483647, %v633
        %vm670 = vcmp.eq.f32.partialorder %v669, 8.507059e+37
        %v671 = vand.u32 %v633, 2147483648
        %v672 = vor.u32 1.1754944e-38, %v671
        %v673 = vsel %vm670, %v672, %v668
        %v674 = vmul.f32 %v658, %v673
        %s675 = scalar_lea.vmem [#allocation7], 8
        %v676 = vld [vmem:[%s675] sm:$0xf]
        %v678 = vsel %vm382, %v674, 0
        %v681 = vsel %vm545, %v676, 0
        %683 = vmatpush.msra.mxu0 0.0
        %684 = vmatpush.msra.mxu0 0.0
        %685 = vmatpush.msra.mxu0 0.0
        %686 = vmatpush.msra.mxu0 0.0
        %687 = vmatpush.msra.mxu0 0.0
        %688 = vmatpush.msra.mxu0 0.0
        %689 = vmatpush.msra.mxu0 0.0
        %690 = vmatpush.msra.mxu0 0.0
        %691 = vmatpush.msra.mxu0 0.0
        %692 = vmatpush.msra.mxu0 0.0
        %693 = vmatpush.msra.mxu0 0.0
        %694 = vmatpush.msra.mxu0 0.0
        %695 = vmatpush.msra.mxu0 0.0
        %696 = vmatpush.msra.mxu0 0.0
        %697 = vmatpush.msra.mxu0 0.0
        %698 = vmatpush.msra.mxu0 %v681
        %699 = vmatmul.f32.gmra.mxu0 %v678
        %v700 = vpop.f32.mrf.mxu0
        %v701 = vadd.f32 0.0, %v700
        %702 = vdwg.mxu0
        %v703 = vadd.f32 %v593, %v701
        %s704 = scalar_lea.vmem %s309, 24 [#allocation8]
        %v705 = vld [vmem:[%s704] sm:$0xff]
        %706 = vrot.lane.b32.xlu0 %v377, 116
        %v707 = vpop.permute.xlu0 %706
        %708 = vrot.lane.b32.xlu0 %v375, 84
        %v709 = vpop.permute.xlu0 %708
        %v710 = vsel %vm382, %v707, 0
        %v712 = vsel %vm382, %v709, 0
        %714 = vmatpush.xpose.msra.mxu0 0.0
        %715 = vmatpush.xpose.msra.mxu0 0.0
        %716 = vmatpush.xpose.msra.mxu0 0.0
        %717 = vmatpush.xpose.msra.mxu0 0.0
        %718 = vmatpush.xpose.msra.mxu0 0.0
        %719 = vmatpush.xpose.msra.mxu0 0.0
        %720 = vmatpush.xpose.msra.mxu0 0.0
        %721 = vmatpush.xpose.msra.mxu0 0.0
        %722 = vmatpush.xpose.msra.mxu0 0.0
        %723 = vmatpush.xpose.msra.mxu0 0.0
        %724 = vmatpush.xpose.msra.mxu0 0.0
        %725 = vmatpush.xpose.msra.mxu0 0.0
        %726 = vmatpush.xpose.msra.mxu0 0.0
        %727 = vmatpush.xpose.msra.mxu0 0.0
        %728 = vmatpush.xpose.msra.mxu0 0.0
        %729 = vmatpush.xpose.msra.mxu0 %v712
        %730 = vmatmul.f32.gmra.mxu0 %v710
        %v731 = vpop.f32.mrf.mxu0
        %v732 = vadd.f32 %v705, %v731
        %733 = vdwg.mxu0
        %v734 = vsel %vm408, %v732, -inf
        %735 = vmax.xlane.f32.xlu0 %v734
        %v736 = vpop.xlane.xlu0 %735
        %v737 = vsub.f32 %v732, %v736
        %v738 = vmul.f32 %v737, 1.442695
        %v739 = vpow.pop %v738
        %v740 = vsel %vm408, %v739, 0.0
        %741 = vadd.xlane.f32.xlu0 %v740
        %v742 = vpop.xlane.xlu0 %741
        %743 = vrot.lane.b32.xlu0 %v375, 52
        %v744 = vpop.permute.xlu0 %743
        %v747 = vsel %vm408, %v739, 0
        %749 = vmatpush.msra.mxu0 0.0
        %750 = vmatpush.msra.mxu0 0.0
        %751 = vmatpush.msra.mxu0 0.0
        %752 = vmatpush.msra.mxu0 0.0
        %753 = vmatpush.msra.mxu0 0.0
        %754 = vmatpush.msra.mxu0 0.0
        %755 = vmatpush.msra.mxu0 0.0
        %756 = vmatpush.msra.mxu0 0.0
        %757 = vmatpush.msra.mxu0 0.0
        %758 = vmatpush.msra.mxu0 0.0
        %759 = vmatpush.msra.mxu0 0.0
        %760 = vmatpush.msra.mxu0 0.0
        %761 = vmatpush.msra.mxu0 0.0
        %762 = vmatpush.msra.mxu0 0.0
        %763 = vmatpush.msra.mxu0 0.0
        %764 = vmatpush.msra.mxu0 %v744
        %765 = vmatmul.f32.gmra.mxu0 %v747
        %v766 = vpop.f32.mrf.mxu0
        %v767 = vadd.f32 0.0, %v766
        %768 = vdwg.mxu0
        %v769 = vrcp.pop %v742
        %v770 = vmul.f32 %v742, %v769
        %v771 = vsub.f32 1.0, %v770
        %v772 = vmul.f32 %v769, %v771
        %v773 = vadd.f32 %v769, %v772
        %vm774 = vweird.f32 %v742
        %vm775 = vweird.f32 %v769
        %vm776 = vmor %vm774, %vm775
        %v777 = vsel %vm776, %v769, %v773
        %v778 = vand.u32 2147483647, %v742
        %vm779 = vcmp.eq.f32.partialorder %v778, 8.507059e+37
        %v780 = vand.u32 %v742, 2147483648
        %v781 = vor.u32 1.1754944e-38, %v780
        %v782 = vsel %vm779, %v781, %v777
        %v783 = vmul.f32 %v767, %v782
        %s784 = scalar_lea.vmem [#allocation7], 12
        %v785 = vld [vmem:[%s784] sm:$0xf]
        %v787 = vsel %vm382, %v783, 0
        %v790 = vsel %vm545, %v785, 0
        %792 = vmatpush.msra.mxu0 0.0
        %793 = vmatpush.msra.mxu0 0.0
        %794 = vmatpush.msra.mxu0 0.0
        %795 = vmatpush.msra.mxu0 0.0
        %796 = vmatpush.msra.mxu0 0.0
        %797 = vmatpush.msra.mxu0 0.0
        %798 = vmatpush.msra.mxu0 0.0
        %799 = vmatpush.msra.mxu0 0.0
        %800 = vmatpush.msra.mxu0 0.0
        %801 = vmatpush.msra.mxu0 0.0
        %802 = vmatpush.msra.mxu0 0.0
        %803 = vmatpush.msra.mxu0 0.0
        %804 = vmatpush.msra.mxu0 0.0
        %805 = vmatpush.msra.mxu0 0.0
        %806 = vmatpush.msra.mxu0 0.0
        %807 = vmatpush.msra.mxu0 %v790
        %808 = vmatmul.f32.gmra.mxu0 %v787
        %v809 = vpop.f32.mrf.mxu0
        %v810 = vadd.f32 0.0, %v809
        %811 = vdwg.mxu0
        %v812 = vadd.f32 %v703, %v810
        %s813 = scalar_lea.vmem %s309, 32 [#allocation8]
        %v814 = vld [vmem:[%s813] sm:$0xff]
        %815 = vrot.lane.b32.xlu0 %v377, 112
        %v816 = vpop.permute.xlu0 %815
        %817 = vrot.lane.b32.xlu0 %v375, 80
        %v818 = vpop.permute.xlu0 %817
        %v819 = vsel %vm382, %v816, 0
        %v821 = vsel %vm382, %v818, 0
        %823 = vmatpush.xpose.msra.mxu0 0.0
        %824 = vmatpush.xpose.msra.mxu0 0.0
        %825 = vmatpush.xpose.msra.mxu0 0.0
        %826 = vmatpush.xpose.msra.mxu0 0.0
        %827 = vmatpush.xpose.msra.mxu0 0.0
        %828 = vmatpush.xpose.msra.mxu0 0.0
        %829 = vmatpush.xpose.msra.mxu0 0.0
        %830 = vmatpush.xpose.msra.mxu0 0.0
        %831 = vmatpush.xpose.msra.mxu0 0.0
        %832 = vmatpush.xpose.msra.mxu0 0.0
        %833 = vmatpush.xpose.msra.mxu0 0.0
        %834 = vmatpush.xpose.msra.mxu0 0.0
        %835 = vmatpush.xpose.msra.mxu0 0.0
        %836 = vmatpush.xpose.msra.mxu0 0.0
        %837 = vmatpush.xpose.msra.mxu0 0.0
        %838 = vmatpush.xpose.msra.mxu0 %v821
        %839 = vmatmul.f32.gmra.mxu0 %v819
        %v840 = vpop.f32.mrf.mxu0
        %v841 = vadd.f32 %v814, %v840
        %842 = vdwg.mxu0
        %v843 = vsel %vm408, %v841, -inf
        %844 = vmax.xlane.f32.xlu0 %v843
        %v845 = vpop.xlane.xlu0 %844
        %v846 = vsub.f32 %v841, %v845
        %v847 = vmul.f32 %v846, 1.442695
        %v848 = vpow.pop %v847
        %v849 = vsel %vm408, %v848, 0.0
        %850 = vadd.xlane.f32.xlu0 %v849
        %v851 = vpop.xlane.xlu0 %850
        %852 = vrot.lane.b32.xlu0 %v375, 48
        %v853 = vpop.permute.xlu0 %852
        %v856 = vsel %vm408, %v848, 0
        %858 = vmatpush.msra.mxu0 0.0
        %859 = vmatpush.msra.mxu0 0.0
        %860 = vmatpush.msra.mxu0 0.0
        %861 = vmatpush.msra.mxu0 0.0
        %862 = vmatpush.msra.mxu0 0.0
        %863 = vmatpush.msra.mxu0 0.0
        %864 = vmatpush.msra.mxu0 0.0
        %865 = vmatpush.msra.mxu0 0.0
        %866 = vmatpush.msra.mxu0 0.0
        %867 = vmatpush.msra.mxu0 0.0
        %868 = vmatpush.msra.mxu0 0.0
        %869 = vmatpush.msra.mxu0 0.0
        %870 = vmatpush.msra.mxu0 0.0
        %871 = vmatpush.msra.mxu0 0.0
        %872 = vmatpush.msra.mxu0 0.0
        %873 = vmatpush.msra.mxu0 %v853
        %874 = vmatmul.f32.gmra.mxu0 %v856
        %v875 = vpop.f32.mrf.mxu0
        %v876 = vadd.f32 0.0, %v875
        %877 = vdwg.mxu0
        %v878 = vrcp.pop %v851
        %v879 = vmul.f32 %v851, %v878
        %v880 = vsub.f32 1.0, %v879
        %v881 = vmul.f32 %v878, %v880
        %v882 = vadd.f32 %v878, %v881
        %vm883 = vweird.f32 %v851
        %vm884 = vweird.f32 %v878
        %vm885 = vmor %vm883, %vm884
        %v886 = vsel %vm885, %v878, %v882
        %v887 = vand.u32 2147483647, %v851
        %vm888 = vcmp.eq.f32.partialorder %v887, 8.507059e+37
        %v889 = vand.u32 %v851, 2147483648
        %v890 = vor.u32 1.1754944e-38, %v889
        %v891 = vsel %vm888, %v890, %v886
        %v892 = vmul.f32 %v876, %v891
        %s893 = scalar_lea.vmem [#allocation7], 16
        %v894 = vld [vmem:[%s893] sm:$0xf]
        %v896 = vsel %vm382, %v892, 0
        %v899 = vsel %vm545, %v894, 0
        %901 = vmatpush.msra.mxu0 0.0
        %902 = vmatpush.msra.mxu0 0.0
        %903 = vmatpush.msra.mxu0 0.0
        %904 = vmatpush.msra.mxu0 0.0
        %905 = vmatpush.msra.mxu0 0.0
        %906 = vmatpush.msra.mxu0 0.0
        %907 = vmatpush.msra.mxu0 0.0
        %908 = vmatpush.msra.mxu0 0.0
        %909 = vmatpush.msra.mxu0 0.0
        %910 = vmatpush.msra.mxu0 0.0
        %911 = vmatpush.msra.mxu0 0.0
        %912 = vmatpush.msra.mxu0 0.0
        %913 = vmatpush.msra.mxu0 0.0
        %914 = vmatpush.msra.mxu0 0.0
        %915 = vmatpush.msra.mxu0 0.0
        %916 = vmatpush.msra.mxu0 %v899
        %917 = vmatmul.f32.gmra.mxu0 %v896
        %v918 = vpop.f32.mrf.mxu0
        %v919 = vadd.f32 0.0, %v918
        %920 = vdwg.mxu0
        %v921 = vadd.f32 %v812, %v919
        %s922 = scalar_lea.vmem %s309, 40 [#allocation8]
        %v923 = vld [vmem:[%s922] sm:$0xff]
        %924 = vrot.lane.b32.xlu0 %v377, 108
        %v925 = vpop.permute.xlu0 %924
        %926 = vrot.lane.b32.xlu0 %v375, 76
        %v927 = vpop.permute.xlu0 %926
        %v928 = vsel %vm382, %v925, 0
        %v930 = vsel %vm382, %v927, 0
        %932 = vmatpush.xpose.msra.mxu0 0.0
        %933 = vmatpush.xpose.msra.mxu0 0.0
        %934 = vmatpush.xpose.msra.mxu0 0.0
        %935 = vmatpush.xpose.msra.mxu0 0.0
        %936 = vmatpush.xpose.msra.mxu0 0.0
        %937 = vmatpush.xpose.msra.mxu0 0.0
        %938 = vmatpush.xpose.msra.mxu0 0.0
        %939 = vmatpush.xpose.msra.mxu0 0.0
        %940 = vmatpush.xpose.msra.mxu0 0.0
        %941 = vmatpush.xpose.msra.mxu0 0.0
        %942 = vmatpush.xpose.msra.mxu0 0.0
        %943 = vmatpush.xpose.msra.mxu0 0.0
        %944 = vmatpush.xpose.msra.mxu0 0.0
        %945 = vmatpush.xpose.msra.mxu0 0.0
        %946 = vmatpush.xpose.msra.mxu0 0.0
        %947 = vmatpush.xpose.msra.mxu0 %v930
        %948 = vmatmul.f32.gmra.mxu0 %v928
        %v949 = vpop.f32.mrf.mxu0
        %v950 = vadd.f32 %v923, %v949
        %951 = vdwg.mxu0
        %v952 = vsel %vm408, %v950, -inf
        %953 = vmax.xlane.f32.xlu0 %v952
        %v954 = vpop.xlane.xlu0 %953
        %v955 = vsub.f32 %v950, %v954
        %v956 = vmul.f32 %v955, 1.442695
        %v957 = vpow.pop %v956
        %v958 = vsel %vm408, %v957, 0.0
        %959 = vadd.xlane.f32.xlu0 %v958
        %v960 = vpop.xlane.xlu0 %959
        %961 = vrot.lane.b32.xlu0 %v375, 44
        %v962 = vpop.permute.xlu0 %961
        %v965 = vsel %vm408, %v957, 0
        %967 = vmatpush.msra.mxu0 0.0
        %968 = vmatpush.msra.mxu0 0.0
        %969 = vmatpush.msra.mxu0 0.0
        %970 = vmatpush.msra.mxu0 0.0
        %971 = vmatpush.msra.mxu0 0.0
        %972 = vmatpush.msra.mxu0 0.0
        %973 = vmatpush.msra.mxu0 0.0
        %974 = vmatpush.msra.mxu0 0.0
        %975 = vmatpush.msra.mxu0 0.0
        %976 = vmatpush.msra.mxu0 0.0
        %977 = vmatpush.msra.mxu0 0.0
        %978 = vmatpush.msra.mxu0 0.0
        %979 = vmatpush.msra.mxu0 0.0
        %980 = vmatpush.msra.mxu0 0.0
        %981 = vmatpush.msra.mxu0 0.0
        %982 = vmatpush.msra.mxu0 %v962
        %983 = vmatmul.f32.gmra.mxu0 %v965
        %v984 = vpop.f32.mrf.mxu0
        %v985 = vadd.f32 0.0, %v984
        %986 = vdwg.mxu0
        %v987 = vrcp.pop %v960
        %v988 = vmul.f32 %v960, %v987
        %v989 = vsub.f32 1.0, %v988
        %v990 = vmul.f32 %v987, %v989
        %v991 = vadd.f32 %v987, %v990
        %vm992 = vweird.f32 %v960
        %vm993 = vweird.f32 %v987
        %vm994 = vmor %vm992, %vm993
        %v995 = vsel %vm994, %v987, %v991
        %v996 = vand.u32 2147483647, %v960
        %vm997 = vcmp.eq.f32.partialorder %v996, 8.507059e+37
        %v998 = vand.u32 %v960, 2147483648
        %v999 = vor.u32 1.1754944e-38, %v998
        %v1000 = vsel %vm997, %v999, %v995
        %v1001 = vmul.f32 %v985, %v1000
        %s1002 = scalar_lea.vmem [#allocation7], 20
        %v1003 = vld [vmem:[%s1002] sm:$0xf]
        %v1005 = vsel %vm382, %v1001, 0
        %v1008 = vsel %vm545, %v1003, 0
        %1010 = vmatpush.msra.mxu0 0.0
        %1011 = vmatpush.msra.mxu0 0.0
        %1012 = vmatpush.msra.mxu0 0.0
        %1013 = vmatpush.msra.mxu0 0.0
        %1014 = vmatpush.msra.mxu0 0.0
        %1015 = vmatpush.msra.mxu0 0.0
        %1016 = vmatpush.msra.mxu0 0.0
        %1017 = vmatpush.msra.mxu0 0.0
        %1018 = vmatpush.msra.mxu0 0.0
        %1019 = vmatpush.msra.mxu0 0.0
        %1020 = vmatpush.msra.mxu0 0.0
        %1021 = vmatpush.msra.mxu0 0.0
        %1022 = vmatpush.msra.mxu0 0.0
        %1023 = vmatpush.msra.mxu0 0.0
        %1024 = vmatpush.msra.mxu0 0.0
        %1025 = vmatpush.msra.mxu0 %v1008
        %1026 = vmatmul.f32.gmra.mxu0 %v1005
        %v1027 = vpop.f32.mrf.mxu0
        %v1028 = vadd.f32 0.0, %v1027
        %1029 = vdwg.mxu0
        %v1030 = vadd.f32 %v921, %v1028
        %s1031 = scalar_lea.vmem %s309, 48 [#allocation8]
        %v1032 = vld [vmem:[%s1031] sm:$0xff]
        %1033 = vrot.lane.b32.xlu0 %v377, 104
        %v1034 = vpop.permute.xlu0 %1033
        %1035 = vrot.lane.b32.xlu0 %v375, 72
        %v1036 = vpop.permute.xlu0 %1035
        %v1037 = vsel %vm382, %v1034, 0
        %v1039 = vsel %vm382, %v1036, 0
        %1041 = vmatpush.xpose.msra.mxu0 0.0
        %1042 = vmatpush.xpose.msra.mxu0 0.0
        %1043 = vmatpush.xpose.msra.mxu0 0.0
        %1044 = vmatpush.xpose.msra.mxu0 0.0
        %1045 = vmatpush.xpose.msra.mxu0 0.0
        %1046 = vmatpush.xpose.msra.mxu0 0.0
        %1047 = vmatpush.xpose.msra.mxu0 0.0
        %1048 = vmatpush.xpose.msra.mxu0 0.0
        %1049 = vmatpush.xpose.msra.mxu0 0.0
        %1050 = vmatpush.xpose.msra.mxu0 0.0
        %1051 = vmatpush.xpose.msra.mxu0 0.0
        %1052 = vmatpush.xpose.msra.mxu0 0.0
        %1053 = vmatpush.xpose.msra.mxu0 0.0
        %1054 = vmatpush.xpose.msra.mxu0 0.0
        %1055 = vmatpush.xpose.msra.mxu0 0.0
        %1056 = vmatpush.xpose.msra.mxu0 %v1039
        %1057 = vmatmul.f32.gmra.mxu0 %v1037
        %v1058 = vpop.f32.mrf.mxu0
        %v1059 = vadd.f32 %v1032, %v1058
        %1060 = vdwg.mxu0
        %v1061 = vsel %vm408, %v1059, -inf
        %1062 = vmax.xlane.f32.xlu0 %v1061
        %v1063 = vpop.xlane.xlu0 %1062
        %v1064 = vsub.f32 %v1059, %v1063
        %v1065 = vmul.f32 %v1064, 1.442695
        %v1066 = vpow.pop %v1065
        %v1067 = vsel %vm408, %v1066, 0.0
        %1068 = vadd.xlane.f32.xlu0 %v1067
        %v1069 = vpop.xlane.xlu0 %1068
        %1070 = vrot.lane.b32.xlu0 %v375, 40
        %v1071 = vpop.permute.xlu0 %1070
        %v1074 = vsel %vm408, %v1066, 0
        %1076 = vmatpush.msra.mxu0 0.0
        %1077 = vmatpush.msra.mxu0 0.0
        %1078 = vmatpush.msra.mxu0 0.0
        %1079 = vmatpush.msra.mxu0 0.0
        %1080 = vmatpush.msra.mxu0 0.0
        %1081 = vmatpush.msra.mxu0 0.0
        %1082 = vmatpush.msra.mxu0 0.0
        %1083 = vmatpush.msra.mxu0 0.0
        %1084 = vmatpush.msra.mxu0 0.0
        %1085 = vmatpush.msra.mxu0 0.0
        %1086 = vmatpush.msra.mxu0 0.0
        %1087 = vmatpush.msra.mxu0 0.0
        %1088 = vmatpush.msra.mxu0 0.0
        %1089 = vmatpush.msra.mxu0 0.0
        %1090 = vmatpush.msra.mxu0 0.0
        %1091 = vmatpush.msra.mxu0 %v1071
        %1092 = vmatmul.f32.gmra.mxu0 %v1074
        %v1093 = vpop.f32.mrf.mxu0
        %v1094 = vadd.f32 0.0, %v1093
        %1095 = vdwg.mxu0
        %v1096 = vrcp.pop %v1069
        %v1097 = vmul.f32 %v1069, %v1096
        %v1098 = vsub.f32 1.0, %v1097
        %v1099 = vmul.f32 %v1096, %v1098
        %v1100 = vadd.f32 %v1096, %v1099
        %vm1101 = vweird.f32 %v1069
        %vm1102 = vweird.f32 %v1096
        %vm1103 = vmor %vm1101, %vm1102
        %v1104 = vsel %vm1103, %v1096, %v1100
        %v1105 = vand.u32 2147483647, %v1069
        %vm1106 = vcmp.eq.f32.partialorder %v1105, 8.507059e+37
        %v1107 = vand.u32 %v1069, 2147483648
        %v1108 = vor.u32 1.1754944e-38, %v1107
        %v1109 = vsel %vm1106, %v1108, %v1104
        %v1110 = vmul.f32 %v1094, %v1109
        %s1111 = scalar_lea.vmem [#allocation7], 24
        %v1112 = vld [vmem:[%s1111] sm:$0xf]
        %v1114 = vsel %vm382, %v1110, 0
        %v1117 = vsel %vm545, %v1112, 0
        %1119 = vmatpush.msra.mxu0 0.0
        %1120 = vmatpush.msra.mxu0 0.0
        %1121 = vmatpush.msra.mxu0 0.0
        %1122 = vmatpush.msra.mxu0 0.0
        %1123 = vmatpush.msra.mxu0 0.0
        %1124 = vmatpush.msra.mxu0 0.0
        %1125 = vmatpush.msra.mxu0 0.0
        %1126 = vmatpush.msra.mxu0 0.0
        %1127 = vmatpush.msra.mxu0 0.0
        %1128 = vmatpush.msra.mxu0 0.0
        %1129 = vmatpush.msra.mxu0 0.0
        %1130 = vmatpush.msra.mxu0 0.0
        %1131 = vmatpush.msra.mxu0 0.0
        %1132 = vmatpush.msra.mxu0 0.0
        %1133 = vmatpush.msra.mxu0 0.0
        %1134 = vmatpush.msra.mxu0 %v1117
        %1135 = vmatmul.f32.gmra.mxu0 %v1114
        %v1136 = vpop.f32.mrf.mxu0
        %v1137 = vadd.f32 0.0, %v1136
        %1138 = vdwg.mxu0
        %v1139 = vadd.f32 %v1030, %v1137
        %s1140 = scalar_lea.vmem %s309, 56 [#allocation8]
        %v1141 = vld [vmem:[%s1140] sm:$0xff]
        %1142 = vrot.lane.b32.xlu0 %v377, 100
        %v1143 = vpop.permute.xlu0 %1142
        %1144 = vrot.lane.b32.xlu0 %v375, 68
        %v1145 = vpop.permute.xlu0 %1144
        %v1146 = vsel %vm382, %v1143, 0
        %v1148 = vsel %vm382, %v1145, 0
        %1150 = vmatpush.xpose.msra.mxu0 0.0
        %1151 = vmatpush.xpose.msra.mxu0 0.0
        %1152 = vmatpush.xpose.msra.mxu0 0.0
        %1153 = vmatpush.xpose.msra.mxu0 0.0
        %1154 = vmatpush.xpose.msra.mxu0 0.0
        %1155 = vmatpush.xpose.msra.mxu0 0.0
        %1156 = vmatpush.xpose.msra.mxu0 0.0
        %1157 = vmatpush.xpose.msra.mxu0 0.0
        %1158 = vmatpush.xpose.msra.mxu0 0.0
        %1159 = vmatpush.xpose.msra.mxu0 0.0
        %1160 = vmatpush.xpose.msra.mxu0 0.0
        %1161 = vmatpush.xpose.msra.mxu0 0.0
        %1162 = vmatpush.xpose.msra.mxu0 0.0
        %1163 = vmatpush.xpose.msra.mxu0 0.0
        %1164 = vmatpush.xpose.msra.mxu0 0.0
        %1165 = vmatpush.xpose.msra.mxu0 %v1148
        %1166 = vmatmul.f32.gmra.mxu0 %v1146
        %v1167 = vpop.f32.mrf.mxu0
        %v1168 = vadd.f32 %v1141, %v1167
        %1169 = vdwg.mxu0
        %v1170 = vsel %vm408, %v1168, -inf
        %1171 = vmax.xlane.f32.xlu0 %v1170
        %v1172 = vpop.xlane.xlu0 %1171
        %v1173 = vsub.f32 %v1168, %v1172
        %v1174 = vmul.f32 %v1173, 1.442695
        %v1175 = vpow.pop %v1174
        %v1176 = vsel %vm408, %v1175, 0.0
        %1177 = vadd.xlane.f32.xlu0 %v1176
        %v1178 = vpop.xlane.xlu0 %1177
        %1179 = vrot.lane.b32.xlu0 %v375, 36
        %v1180 = vpop.permute.xlu0 %1179
        %v1183 = vsel %vm408, %v1175, 0
        %1185 = vmatpush.msra.mxu0 0.0
        %1186 = vmatpush.msra.mxu0 0.0
        %1187 = vmatpush.msra.mxu0 0.0
        %1188 = vmatpush.msra.mxu0 0.0
        %1189 = vmatpush.msra.mxu0 0.0
        %1190 = vmatpush.msra.mxu0 0.0
        %1191 = vmatpush.msra.mxu0 0.0
        %1192 = vmatpush.msra.mxu0 0.0
        %1193 = vmatpush.msra.mxu0 0.0
        %1194 = vmatpush.msra.mxu0 0.0
        %1195 = vmatpush.msra.mxu0 0.0
        %1196 = vmatpush.msra.mxu0 0.0
        %1197 = vmatpush.msra.mxu0 0.0
        %1198 = vmatpush.msra.mxu0 0.0
        %1199 = vmatpush.msra.mxu0 0.0
        %1200 = vmatpush.msra.mxu0 %v1180
        %1201 = vmatmul.f32.gmra.mxu0 %v1183
        %v1202 = vpop.f32.mrf.mxu0
        %v1203 = vadd.f32 0.0, %v1202
        %1204 = vdwg.mxu0
        %v1205 = vrcp.pop %v1178
        %v1206 = vmul.f32 %v1178, %v1205
        %v1207 = vsub.f32 1.0, %v1206
        %v1208 = vmul.f32 %v1205, %v1207
        %v1209 = vadd.f32 %v1205, %v1208
        %vm1210 = vweird.f32 %v1178
        %vm1211 = vweird.f32 %v1205
        %vm1212 = vmor %vm1210, %vm1211
        %v1213 = vsel %vm1212, %v1205, %v1209
        %v1214 = vand.u32 2147483647, %v1178
        %vm1215 = vcmp.eq.f32.partialorder %v1214, 8.507059e+37
        %v1216 = vand.u32 %v1178, 2147483648
        %v1217 = vor.u32 1.1754944e-38, %v1216
        %v1218 = vsel %vm1215, %v1217, %v1213
        %v1219 = vmul.f32 %v1203, %v1218
        %s1220 = scalar_lea.vmem [#allocation7], 28
        %v1221 = vld [vmem:[%s1220] sm:$0xf]
        %v1223 = vsel %vm382, %v1219, 0
        %v1226 = vsel %vm545, %v1221, 0
        %1228 = vmatpush.msra.mxu0 0.0
        %1229 = vmatpush.msra.mxu0 0.0
        %1230 = vmatpush.msra.mxu0 0.0
        %1231 = vmatpush.msra.mxu0 0.0
        %1232 = vmatpush.msra.mxu0 0.0
        %1233 = vmatpush.msra.mxu0 0.0
        %1234 = vmatpush.msra.mxu0 0.0
        %1235 = vmatpush.msra.mxu0 0.0
        %1236 = vmatpush.msra.mxu0 0.0
        %1237 = vmatpush.msra.mxu0 0.0
        %1238 = vmatpush.msra.mxu0 0.0
        %1239 = vmatpush.msra.mxu0 0.0
        %1240 = vmatpush.msra.mxu0 0.0
        %1241 = vmatpush.msra.mxu0 0.0
        %1242 = vmatpush.msra.mxu0 0.0
        %1243 = vmatpush.msra.mxu0 %v1226
        %1244 = vmatmul.f32.gmra.mxu0 %v1223
        %v1245 = vpop.f32.mrf.mxu0
        %v1246 = vadd.f32 0.0, %v1245
        %1247 = vdwg.mxu0
        %v1248 = vadd.f32 %v1139, %v1246
        %v1249 = vld [vmem:[%s4] sm:$0x1]
        %v1251 = vperm.slane %v1249, 0
        %v1253 = vadd.f32 %v1248, %v1251
        %1254 = vst.msk [vmem:[%s343] sm:$0xff] %vm353, %v1253
        %s1255 = sand.u32 %s171, 1
        %s1256 = scalar_lea.sflag [#allocation4], %s1255
        %s1257 = sand.u32 %s171, 1
        %s1258 = smul.addr %s1257, 8
        %s1259 = scalar_lea.vmem [#allocation10], %s1258
        // Predicated region
        $region61: #{tpu_custom_call.1} parent=43 // pred_check
          %p1260 = pneg %p181
        $region62: #{tpu_custom_call.1} parent=43 // pred_check_branch
          %1262 = sbr.rel (%p1260) target = $region64
        $region63: #{tpu_custom_call.1} parent=43 // pred_region
          %1264 = vsyncadd %s1256, 0
          %s1265 = smul.addr %s27, 8
          %s1266 = scalar_lea.hbm %s6, %s1265
          %s1268 = sshll.u32 %s1259, 4
          %s1269 = int_to_ptr.vmem [resolvable:$true] %s1268
          %s1270 = sshll.u32 %s1266, 4
          %s1271 = int_to_ptr.hbm [resolvable:$true] %s1270
          %1273 = dma.vmem_to_hbm [thread:$0]  %s1269, 128, %s1271, %s1256
        $region64: #{tpu_custom_call.1} parent=43 // pred_fallthru
          _
      $region44: #{tpu_custom_call.1} parent=5 // pred_fallthru
        _
      %p1274 = scmp.le.s32.totalorder 2, %s22
      // Predicated region
      $region65: #{tpu_custom_call.1} parent=5 // pred_check
        %p1275 = pneg %p1274
      $region66: #{tpu_custom_call.1} parent=5 // pred_check_branch
        %1277 = sbr.rel (%p1275) target = $region68
      $region67: #{tpu_custom_call.1} parent=5 // pred_region
        %s1278 = ssub.s32 %s22, 2
        // Predicated region
        $region69: #{tpu_custom_call.1} parent=67 // pred_check
          %p1279 = pneg %p187
        $region70: #{tpu_custom_call.1} parent=67 // pred_check_branch
          %1281 = sbr.rel (%p1279) target = $region72
        $region71: #{tpu_custom_call.1} parent=67 // pred_region
          %s1282 = sand.u32 %s172, 1
          %s1283 = scalar_lea.sflag [#allocation4], %s1282
          %s1284 = sand.u32 %s172, 1
          %s1285 = smul.addr %s1284, 8
          %s1286 = scalar_lea.vmem [#allocation10], %s1285
          %1288 = dma.done %s1283, 128
        $region72: #{tpu_custom_call.1} parent=67 // pred_fallthru
          _
      $region68: #{tpu_custom_call.1} parent=5 // pred_fallthru
        _
    $region6: #{tpu_custom_call.1} parent=1 // loop_footer
      %s26 = sadd.s32 1, %s22
    $region7: #{tpu_custom_call.1} parent=1 // loop_footer_branch
      %21 = sbr.rel target = $region3
    $region8: #{tpu_custom_call.1} parent=1 // loop_exit
      _
    %1289 = vsyncpa [#allocation3], 1
    %s1290 = scalar_lea.sflag [#allocation3], 1
    %1291 = vsyncpa %s1290, 1
    %1292 = vsyncpa [#allocation6], 1
    %1293 = vsyncpa [#allocation9], 1
    %s1294 = scalar_lea.sflag [#allocation9], 1
    %1295 = vsyncpa %s1294, 1
    %1296 = vsyncpa [#allocation4], 1
    %s1297 = scalar_lea.sflag [#allocation4], 1
    %1298 = vsyncpa %s1297, 1

</llo_original>
